<compile_context>
chip_gen: v6e
topology: v6e:2x2x1
jax: 0.10.0
libtpu: 0.0.40
codegen_flags: <defaults>
</compile_context>

<pallas_src>
import functools
import math

import jax
import jax.numpy as jnp
from jax.experimental import pallas as pl
from jax.experimental.pallas import tpu as pltpu


# --------------------------- generation-aware knobs ---------------------------

def _vmem_limit_bytes():
    """~48 MiB scoped VMEM on v7x (64 MiB physical), up to 96 MiB on v5e/v6e."""
    try:
        cap = int(pltpu.get_tpu_info().vmem_capacity_bytes)
    except Exception:  # conservative fallback if the query is unavailable
        cap = 128 * 1024 * 1024
    return max(32 * 1024 * 1024, min(cap * 3 // 4, 96 * 1024 * 1024))


_VMEM_LIMIT = _vmem_limit_bytes()
_COMPUTE_DTYPE = jnp.bfloat16   # MXU input dtype; accumulation / softmax / LN stay f32
_ACT_DTYPE = jnp.bfloat16       # inter-layer activation dtype (halves HBM traffic)


def _round_up(x, m):
    return (x + m - 1) // m * m


def _row_tiling(m, cap=256):
    """Return (padded_rows, tile): tile divides padded_rows, tile % 8 == 0, tile <= cap."""
    if m <= cap:
        pm = _round_up(m, 8)
        return pm, pm
    t = cap - cap % 8
    while t >= 8:
        if m % t == 0:
            return m, t
        t -= 8
    t = cap - cap % 8
    return _round_up(m, t), t   # pad to a tile multiple instead of one giant tile


def _seq_tile(s, cap=256):
    """Largest query-row tile <= cap that divides s and is a multiple of 8 (else s)."""
    if s <= cap:
        return s
    t = cap - cap % 8
    while t >= 8:
        if s % t == 0:
            return t
        t -= 8
    # TODO(synk): pad + mask the sequence axis for awkward S; fall back to one tile.
    return s


# ----------------------------- Pallas kernels ------------------------------


def _embed_kernel(x_ref, w_ref, b_ref, o_ref):
    x = x_ref[...].astype(w_ref.dtype)
    y = jnp.dot(x, w_ref[...], preferred_element_type=jnp.float32) + b_ref[...]
    o_ref[...] = y.astype(o_ref.dtype)


def embed(x, w, b):
    M, C = x.shape
    E = w.shape[1]
    pm, tm = _row_tiling(M)
    if pm != M:
        x = jnp.pad(x, ((0, pm - M), (0, 0)))
    out = pl.pallas_call(
        _embed_kernel,
        grid=(pm // tm,),
        in_specs=[
            pl.BlockSpec((tm, C), lambda i: (i, 0)),
            pl.BlockSpec((C, E), lambda i: (0, 0)),   # weight stays VMEM-resident
            pl.BlockSpec((1, E), lambda i: (0, 0)),
        ],
        out_specs=pl.BlockSpec((tm, E), lambda i: (i, 0)),
        out_shape=jax.ShapeDtypeStruct((pm, E), _ACT_DTYPE),
        compiler_params=pltpu.CompilerParams(
            dimension_semantics=("parallel",), vmem_limit_bytes=_VMEM_LIMIT),
    )(x, w, b)
    return out[:M] if pm != M else out


def _attn_block_kernel(xq_ref, xkv_ref, wq_ref, wkv_ref, wo_ref, wob_ref, g_ref, b_ref,
                       o_ref, kv_sc, attn_sc, *, heads, eps):
    """Fused: shared per-head q/k/v projection + softmax attention + fc_out
    + residual + LayerNorm for one (batch, query-row-tile) grid step."""
    xq = xq_ref[0]                                   # (TQ, E) bf16
    TQ, E = xq.shape
    D = E // heads

    # K/V projection for the whole sequence of this batch element is computed once
    # (query-tile axis is the innermost, "arbitrary" grid axis) and cached in VMEM.
    @pl.when(pl.program_id(1) == 0)
    def _():
        kv = jnp.dot(xkv_ref[0], wkv_ref[...], preferred_element_type=jnp.float32)
        kv_sc[...] = kv.astype(_COMPUTE_DTYPE)       # (S, 2E)

    # Query projection; the 1/sqrt(embed_size) softmax scale is pre-folded into Wq.
    q = jnp.dot(xq, wq_ref[...],
                preferred_element_type=jnp.float32).astype(_COMPUTE_DTYPE)   # (TQ, E)
    kv = kv_sc[...]
    k, v = kv[:, :E], kv[:, E:]

    # TODO(synk): per-head D-lane slices become masked loads/stores when D < 128; a
    #             (heads, S, D) layout / flash key-tiling would remove that overhead.
    for h in range(heads):                            # static unroll over heads
        sl = slice(h * D, (h + 1) * D)
        s = jax.lax.dot_general(q[:, sl], k[:, sl], (((1,), (1,)), ((), ())),
                                preferred_element_type=jnp.float32)          # (TQ, S)
        m = jnp.max(s, axis=-1, keepdims=True)
        p = jnp.exp(s - m)
        p = p * pl.reciprocal(jnp.sum(p, axis=-1, keepdims=True), approx=True)
        attn_sc[:, sl] = jnp.dot(p.astype(_COMPUTE_DTYPE), v[:, sl],
                                 preferred_element_type=jnp.float32)         # (TQ, D)

    y = jnp.dot(attn_sc[...].astype(_COMPUTE_DTYPE), wo_ref[...],
                preferred_element_type=jnp.float32) + wob_ref[...]
    z = y + xq.astype(jnp.float32)                    # residual (query)
    mean = jnp.mean(z, axis=-1, keepdims=True)
    var = jnp.mean(jnp.square(z - mean), axis=-1, keepdims=True)
    zn = (z - mean) * jax.lax.rsqrt(var + eps)
    o_ref[0] = (zn * g_ref[...] + b_ref[...]).astype(o_ref.dtype)


def attention_block(x_nse, wq_blk, wkv_blk, wo_w, wo_b, gamma, beta, *, heads, eps=1e-5):
    N, S, E = x_nse.shape
    tq = _seq_tile(S)
    return pl.pallas_call(
        functools.partial(_attn_block_kernel, heads=heads, eps=eps),
        grid=(N, S // tq),
        in_specs=[
            pl.BlockSpec((1, tq, E), lambda n, i: (n, i, 0)),   # query rows
            pl.BlockSpec((1, S, E), lambda n, i: (n, 0, 0)),    # full sequence for K/V
            pl.BlockSpec((E, E), lambda n, i: (0, 0)),          # Wq (block-diag, scaled)
            pl.BlockSpec((E, 2 * E), lambda n, i: (0, 0)),      # [Wk | Wv] (block-diag)
            pl.BlockSpec((E, E), lambda n, i: (0, 0)),          # fc_out weight
            pl.BlockSpec((1, E), lambda n, i: (0, 0)),          # fc_out bias
            pl.BlockSpec((1, E), lambda n, i: (0, 0)),          # LN gamma
            pl.BlockSpec((1, E), lambda n, i: (0, 0)),          # LN beta
        ],
        out_specs=pl.BlockSpec((1, tq, E), lambda n, i: (n, i, 0)),
        out_shape=jax.ShapeDtypeStruct((N, S, E), _ACT_DTYPE),
        scratch_shapes=[pltpu.VMEM((S, 2 * E), _COMPUTE_DTYPE),   # cached K/V projection
                        pltpu.VMEM((tq, E), jnp.float32)],        # per-head output slab
        compiler_params=pltpu.CompilerParams(
            # TODO(synk): q-tile axis carries the K/V scratch, so it stays "arbitrary";
            #             for N=1 on v7x split heads across cores instead.
            dimension_semantics=("parallel", "arbitrary"),
            vmem_limit_bytes=_VMEM_LIMIT),
    )(x_nse, x_nse, wq_blk, wkv_blk, wo_w, wo_b, gamma, beta)


def _ffn_block_kernel(h_ref, w1_ref, b1_ref, w2_ref, b2_ref, g_ref, b_ref, o_ref, *, eps):
    # Fused: ff1 + ReLU + ff2 + residual + LayerNorm. Expanded activation never hits HBM.
    h = h_ref[...]                                    # (TM, E) bf16
    f = jnp.dot(h, w1_ref[...], preferred_element_type=jnp.float32) + b1_ref[...]
    f = jnp.maximum(f, 0.0)
    y = jnp.dot(f.astype(w2_ref.dtype), w2_ref[...],
                preferred_element_type=jnp.float32) + b2_ref[...]
    z = y + h.astype(jnp.float32)
    mean = jnp.mean(z, axis=-1, keepdims=True)
    var = jnp.mean(jnp.square(z - mean), axis=-1, keepdims=True)
    zn = (z - mean) * jax.lax.rsqrt(var + eps)
    o_ref[...] = (zn * g_ref[...] + b_ref[...]).astype(o_ref.dtype)


def ffn_block(h, w1, b1, w2, b2, gamma, beta, eps=1e-5):
    M, E = h.shape
    F = w1.shape[1]
    pm, tm = _row_tiling(M)
    if pm != M:
        h = jnp.pad(h, ((0, pm - M), (0, 0)))
    out = pl.pallas_call(
        functools.partial(_ffn_block_kernel, eps=eps),
        grid=(pm // tm,),
        in_specs=[
            pl.BlockSpec((tm, E), lambda i: (i, 0)),
            pl.BlockSpec((E, F), lambda i: (0, 0)),
            pl.BlockSpec((1, F), lambda i: (0, 0)),
            pl.BlockSpec((F, E), lambda i: (0, 0)),
            pl.BlockSpec((1, E), lambda i: (0, 0)),
            pl.BlockSpec((1, E), lambda i: (0, 0)),
            pl.BlockSpec((1, E), lambda i: (0, 0)),
        ],
        out_specs=pl.BlockSpec((tm, E), lambda i: (i, 0)),
        out_shape=jax.ShapeDtypeStruct((pm, E), _ACT_DTYPE),
        compiler_params=pltpu.CompilerParams(
            dimension_semantics=("parallel",), vmem_limit_bytes=_VMEM_LIMIT),
    )(h, w1, b1, w2, b2, gamma, beta)
    return out[:M] if pm != M else out


# --------------------------- parameters (glue) ------------------------------


def init_params(key, input_size, embed_size, num_layers, heads, forward_expansion):
    E = embed_size
    D = E // heads
    F = forward_expansion * E
    assert D * heads == E

    def dense(k, fan_in, fan_out, bias=True):
        k1, k2 = jax.random.split(k)
        lim = 1.0 / math.sqrt(fan_in)
        w = jax.random.uniform(k1, (fan_in, fan_out), jnp.float32, -lim, lim)
        b = (jax.random.uniform(k2, (fan_out,), jnp.float32, -lim, lim)
             if bias else jnp.zeros((fan_out,), jnp.float32))
        return w, b

    keys = jax.random.split(key, 1 + num_layers)
    ew, eb = dense(keys[0], input_size, E)
    params = {"embed_w": ew.astype(_COMPUTE_DTYPE), "embed_b": eb.reshape(1, E)}

    eye_h = jnp.eye(heads, dtype=jnp.float32)
    scale = 1.0 / math.sqrt(E)    # Aladdin-style scaling by sqrt(model dim)
    layers = []
    for l in range(num_layers):
        ks = jax.random.split(keys[1 + l], 6)
        wq = dense(ks[0], D, D, bias=False)[0]
        wk = dense(ks[1], D, D, bias=False)[0]
        wv = dense(ks[2], D, D, bias=False)[0]
        wo_w, wo_b = dense(ks[3], E, E)
        ff1_w, ff1_b = dense(ks[4], E, F)
        ff2_w, ff2_b = dense(ks[5], F, E)
        layers.append({
            # Shared per-head (D, D) projections packed block-diagonally ONCE at init
            # (kron hoisted out of the forward); softmax scale folded into Wq.
            "wq_blk": (jnp.kron(eye_h, wq) * scale).astype(_COMPUTE_DTYPE),       # (E, E)
            "wkv_blk": jnp.concatenate(
                [jnp.kron(eye_h, wk), jnp.kron(eye_h, wv)], axis=1
            ).astype(_COMPUTE_DTYPE),                                             # (E, 2E)
            "wo_w": wo_w.astype(_COMPUTE_DTYPE), "wo_b": wo_b.reshape(1, E),
            "ln1_g": jnp.ones((1, E), jnp.float32), "ln1_b": jnp.zeros((1, E), jnp.float32),
            "ff1_w": ff1_w.astype(_COMPUTE_DTYPE), "ff1_b": ff1_b.reshape(1, F),
            "ff2_w": ff2_w.astype(_COMPUTE_DTYPE), "ff2_b": ff2_b.reshape(1, E),
            "ln2_g": jnp.ones((1, E), jnp.float32), "ln2_b": jnp.zeros((1, E), jnp.float32),
        })
    params["layers"] = layers
    return params


# ------------------------------ forward pass --------------------------------


def encoder_forward(params, x, heads):
    N, S, C = x.shape
    E = params["embed_w"].shape[1]
    M = N * S

    out = embed(x.reshape(M, C), params["embed_w"], params["embed_b"])   # (M, E) bf16
    for layer in params["layers"]:
        h = attention_block(out.reshape(N, S, E),
                            layer["wq_blk"], layer["wkv_blk"],
                            layer["wo_w"], layer["wo_b"],
                            layer["ln1_g"], layer["ln1_b"], heads=heads)
        out = ffn_block(h.reshape(M, E),
                        layer["ff1_w"], layer["ff1_b"],
                        layer["ff2_w"], layer["ff2_b"],
                        layer["ln2_g"], layer["ln2_b"])
    return out.reshape(N, S, E).astype(jnp.float32)


# ---------------------------------- main -------------------------------------

if __name__ == "__main__":
    # Small shapes consistent with the module
    N, S = 2, 8
    input_size = 4
    embed_size = 32
    heads = 4
    num_layers = 2
    forward_expansion = 2

    key = jax.random.PRNGKey(0)
    kx, kp = jax.random.split(key)
    x = jax.random.normal(kx, (N, S, input_size), jnp.float32)
    params = init_params(kp, input_size, embed_size, num_layers, heads, forward_expansion)

    fwd = jax.jit(functools.partial(encoder_forward, heads=heads))
    out = jax.block_until_ready(fwd(params, x))
    assert out.shape == (N, S, embed_size)
    assert bool(jnp.all(jnp.isfinite(out)))
    print("KERNEL_OK")
</pallas_src>

<mosaic_0001>
module attributes {stable_mosaic.version = 11 : i64} {
  func.func @_embed_kernel(%arg0: i32, %arg1: memref<16x4xf32, #tpu.memory_space<vmem>>, %arg2: memref<4x32xbf16, #tpu.memory_space<vmem>>, %arg3: memref<1x32xf32, #tpu.memory_space<vmem>>, %arg4: memref<16x32xbf16, #tpu.memory_space<vmem>>) attributes {dimension_semantics = [#tpu.dimension_semantics<parallel>], iteration_bounds = array<i64: 1>, scalar_prefetch = 0 : i64, scratch_operands = 0 : i64, tpu.core_type = #tpu.core_type<tc>, window_params = [{transform_indices = @transform_0, window_bounds = array<i64: 16, 4>}, {pipeline_mode = #tpu.pipeline_mode<synchronous>, transform_indices = @transform_1, window_bounds = array<i64: 4, 32>}, {pipeline_mode = #tpu.pipeline_mode<synchronous>, transform_indices = @transform_2, window_bounds = array<i64: 1, 32>}, {transform_indices = @transform_3, window_bounds = array<i64: 16, 32>}]} {
    %c0 = arith.constant 0 : index
    %c0_0 = arith.constant 0 : index
    %0 = vector.load %arg1[%c0, %c0_0] : memref<16x4xf32, #tpu.memory_space<vmem>>, vector<16x4xf32>
    %1 = arith.truncf %0 : vector<16x4xf32> to vector<16x4xbf16>
    %c0_1 = arith.constant 0 : index
    %c0_2 = arith.constant 0 : index
    %2 = vector.load %arg2[%c0_1, %c0_2] : memref<4x32xbf16, #tpu.memory_space<vmem>>, vector<4x32xbf16>
    %cst = arith.constant dense<0.000000e+00> : vector<16x32xf32>
    %3 = tpu.matmul %1, %2, %cst {dimension_numbers = #tpu.dot_dimension_numbers<[1], [0], [0], [1], [0, 0, 1, 1], [], []>} : vector<16x4xbf16>, vector<4x32xbf16>, vector<16x32xf32> -> vector<16x32xf32>
    %c0_3 = arith.constant 0 : index
    %c0_4 = arith.constant 0 : index
    %4 = vector.load %arg3[%c0_3, %c0_4] : memref<1x32xf32, #tpu.memory_space<vmem>>, vector<1x32xf32>
    %5 = vector.broadcast %4 : vector<1x32xf32> to vector<16x32xf32>
    %6 = arith.addf %3, %5 : vector<16x32xf32>
    %7 = arith.truncf %6 : vector<16x32xf32> to vector<16x32xbf16>
    %c0_5 = arith.constant 0 : index
    %c0_6 = arith.constant 0 : index
    %8 = vector.load %arg4[%c0_5, %c0_6] : memref<16x32xbf16, #tpu.memory_space<vmem>>, vector<16x32xbf16>
    tpu.vector_store %arg4[%c0_5, %c0_6], %7 {strides = array<i32>} : memref<16x32xbf16, #tpu.memory_space<vmem>>, vector<16x32xbf16>,
    return
  }
  func.func @transform_0(%arg0: i32) -> (i32, i32) {
    %c0_i32 = arith.constant 0 : i32
    %c0_i32_0 = arith.constant 0 : i32
    return %arg0, %c0_i32 : i32, i32
  }
  func.func @transform_1(%arg0: i32) -> (i32, i32) {
    %c0_i32 = arith.constant 0 : i32
    %c0_i32_0 = arith.constant 0 : i32
    %c0_i32_1 = arith.constant 0 : i32
    return %c0_i32, %c0_i32_0 : i32, i32
  }
  func.func @transform_2(%arg0: i32) -> (i32, i32) {
    %c0_i32 = arith.constant 0 : i32
    %c0_i32_0 = arith.constant 0 : i32
    %c0_i32_1 = arith.constant 0 : i32
    return %c0_i32, %c0_i32_0 : i32, i32
  }
  func.func @transform_3(%arg0: i32) -> (i32, i32) {
    %c0_i32 = arith.constant 0 : i32
    %c0_i32_0 = arith.constant 0 : i32
    return %arg0, %c0_i32 : i32, i32
  }
}

module attributes {stable_mosaic.version = 11 : i64} {
  func.func @_attn_block_kernel(%arg0: i32, %arg1: i32, %arg2: memref<1x8x32xbf16, #tpu.memory_space<vmem>>, %arg3: memref<1x8x32xbf16, #tpu.memory_space<vmem>>, %arg4: memref<32x32xbf16, #tpu.memory_space<vmem>>, %arg5: memref<32x64xbf16, #tpu.memory_space<vmem>>, %arg6: memref<32x32xbf16, #tpu.memory_space<vmem>>, %arg7: memref<1x32xf32, #tpu.memory_space<vmem>>, %arg8: memref<1x32xf32, #tpu.memory_space<vmem>>, %arg9: memref<1x32xf32, #tpu.memory_space<vmem>>, %arg10: memref<1x8x32xbf16, #tpu.memory_space<vmem>>, %arg11: memref<8x64xbf16, #tpu.memory_space<vmem>>, %arg12: memref<8x32xf32, #tpu.memory_space<vmem>>) attributes {dimension_semantics = [#tpu.dimension_semantics<parallel>, #tpu.dimension_semantics<arbitrary>], iteration_bounds = array<i64: 2, 1>, scalar_prefetch = 0 : i64, scratch_operands = 2 : i64, tpu.core_type = #tpu.core_type<tc>, window_params = [{transform_indices = @transform_0, window_bounds = array<i64: 1, 8, 32>}, {transform_indices = @transform_1, window_bounds = array<i64: 1, 8, 32>}, {pipeline_mode = #tpu.pipeline_mode<synchronous>, transform_indices = @transform_2, window_bounds = array<i64: 32, 32>}, {pipeline_mode = #tpu.pipeline_mode<synchronous>, transform_indices = @transform_3, window_bounds = array<i64: 32, 64>}, {pipeline_mode = #tpu.pipeline_mode<synchronous>, transform_indices = @transform_4, window_bounds = array<i64: 32, 32>}, {pipeline_mode = #tpu.pipeline_mode<synchronous>, transform_indices = @transform_5, window_bounds = array<i64: 1, 32>}, {pipeline_mode = #tpu.pipeline_mode<synchronous>, transform_indices = @transform_6, window_bounds = array<i64: 1, 32>}, {pipeline_mode = #tpu.pipeline_mode<synchronous>, transform_indices = @transform_7, window_bounds = array<i64: 1, 32>}, {transform_indices = @transform_8, window_bounds = array<i64: 1, 8, 32>}]} {
    %c0 = arith.constant 0 : index
    %c0_0 = arith.constant 0 : index
    %c0_1 = arith.constant 0 : index
    %0 = vector.load %arg2[%c0, %c0_0, %c0_1] : memref<1x8x32xbf16, #tpu.memory_space<vmem>>, vector<1x8x32xbf16>
    %1 = vector.shape_cast %0 : vector<1x8x32xbf16> to vector<8x32xbf16>
    %c0_i32 = arith.constant 0 : i32
    %2 = arith.cmpi eq, %arg1, %c0_i32 : i32
    %3 = arith.extui %2 : i1 to i32
    %c0_i32_2 = arith.constant 0 : i32
    %4 = arith.cmpi ne, %3, %c0_i32_2 : i32
    scf.if %4 {
      %c0_47 = arith.constant 0 : index
      %c0_48 = arith.constant 0 : index
      %c0_49 = arith.constant 0 : index
      %116 = vector.load %arg3[%c0_47, %c0_48, %c0_49] : memref<1x8x32xbf16, #tpu.memory_space<vmem>>, vector<1x8x32xbf16>
      %117 = vector.shape_cast %116 : vector<1x8x32xbf16> to vector<8x32xbf16>
      %c0_50 = arith.constant 0 : index
      %c0_51 = arith.constant 0 : index
      %118 = vector.load %arg5[%c0_50, %c0_51] : memref<32x64xbf16, #tpu.memory_space<vmem>>, vector<32x64xbf16>
      %cst_52 = arith.constant dense<0.000000e+00> : vector<8x64xf32>
      %119 = tpu.matmul %117, %118, %cst_52 {dimension_numbers = #tpu.dot_dimension_numbers<[1], [0], [0], [1], [0, 0, 1, 1], [], []>} : vector<8x32xbf16>, vector<32x64xbf16>, vector<8x64xf32> -> vector<8x64xf32>
      %120 = arith.truncf %119 : vector<8x64xf32> to vector<8x64xbf16>
      %c0_53 = arith.constant 0 : index
      %c0_54 = arith.constant 0 : index
      %121 = vector.load %arg11[%c0_53, %c0_54] : memref<8x64xbf16, #tpu.memory_space<vmem>>, vector<8x64xbf16>
      tpu.vector_store %arg11[%c0_53, %c0_54], %120 {strides = array<i32>} : memref<8x64xbf16, #tpu.memory_space<vmem>>, vector<8x64xbf16>,
    } else {
    }
    %c0_3 = arith.constant 0 : index
    %c0_4 = arith.constant 0 : index
    %5 = vector.load %arg4[%c0_3, %c0_4] : memref<32x32xbf16, #tpu.memory_space<vmem>>, vector<32x32xbf16>
    %cst = arith.constant dense<0.000000e+00> : vector<8x32xf32>
    %6 = tpu.matmul %1, %5, %cst {dimension_numbers = #tpu.dot_dimension_numbers<[1], [0], [0], [1], [0, 0, 1, 1], [], []>} : vector<8x32xbf16>, vector<32x32xbf16>, vector<8x32xf32> -> vector<8x32xf32>
    %7 = arith.truncf %6 : vector<8x32xf32> to vector<8x32xbf16>
    %c0_5 = arith.constant 0 : index
    %c0_6 = arith.constant 0 : index
    %8 = vector.load %arg11[%c0_5, %c0_6] : memref<8x64xbf16, #tpu.memory_space<vmem>>, vector<8x64xbf16>
    %9 = vector.extract_strided_slice %8 {offsets = [0, 0], sizes = [8, 32], strides = [1, 1]} : vector<8x64xbf16> to vector<8x32xbf16>
    %10 = vector.extract_strided_slice %8 {offsets = [0, 32], sizes = [8, 32], strides = [1, 1]} : vector<8x64xbf16> to vector<8x32xbf16>
    %11 = vector.extract_strided_slice %7 {offsets = [0, 0], sizes = [8, 8], strides = [1, 1]} : vector<8x32xbf16> to vector<8x8xbf16>
    %12 = vector.extract_strided_slice %9 {offsets = [0, 0], sizes = [8, 8], strides = [1, 1]} : vector<8x32xbf16> to vector<8x8xbf16>
    %cst_7 = arith.constant dense<0.000000e+00> : vector<8x8xf32>
    %13 = tpu.matmul %11, %12, %cst_7 {dimension_numbers = #tpu.dot_dimension_numbers<[1], [1], [0], [0], [0, 0, 1, 0], [], []>} : vector<8x8xbf16>, vector<8x8xbf16>, vector<8x8xf32> -> vector<8x8xf32>
    %cst_8 = arith.constant dense<0xFF800000> : vector<8xf32>
    %14 = vector.multi_reduction <maximumf>, %13, %cst_8 [1] : vector<8x8xf32> to vector<8xf32>
    %15 = vector.shape_cast %14 : vector<8xf32> to vector<8x1xf32>
    %16 = vector.broadcast %15 : vector<8x1xf32> to vector<8x8xf32>
    %17 = arith.subf %13, %16 : vector<8x8xf32>
    %18 = math.exp %17 : vector<8x8xf32>
    %cst_9 = arith.constant dense<0.000000e+00> : vector<8xf32>
    %19 = vector.multi_reduction <add>, %18, %cst_9 [1] : vector<8x8xf32> to vector<8xf32>
    %20 = vector.shape_cast %19 : vector<8xf32> to vector<8x1xf32>
    %21 = tpu.reciprocal %20 {approx = true} : vector<8x1xf32> -> vector<8x1xf32>
    %22 = vector.broadcast %21 : vector<8x1xf32> to vector<8x8xf32>
    %23 = arith.mulf %18, %22 : vector<8x8xf32>
    %24 = arith.truncf %23 : vector<8x8xf32> to vector<8x8xbf16>
    %25 = vector.extract_strided_slice %10 {offsets = [0, 0], sizes = [8, 8], strides = [1, 1]} : vector<8x32xbf16> to vector<8x8xbf16>
    %cst_10 = arith.constant dense<0.000000e+00> : vector<8x8xf32>
    %26 = tpu.matmul %24, %25, %cst_10 {dimension_numbers = #tpu.dot_dimension_numbers<[1], [0], [0], [1], [0, 0, 1, 1], [], []>} : vector<8x8xbf16>, vector<8x8xbf16>, vector<8x8xf32> -> vector<8x8xf32>
    %c0_11 = arith.constant 0 : index
    %c0_12 = arith.constant 0 : index
    %27 = vector.load %arg12[%c0_11, %c0_12] : memref<8x32xf32, #tpu.memory_space<vmem>>, vector<8x8xf32>
    tpu.vector_store %arg12[%c0_11, %c0_12], %26 {strides = array<i32>} : memref<8x32xf32, #tpu.memory_space<vmem>>, vector<8x8xf32>,
    %28 = vector.extract_strided_slice %7 {offsets = [0, 8], sizes = [8, 8], strides = [1, 1]} : vector<8x32xbf16> to vector<8x8xbf16>
    %29 = vector.extract_strided_slice %9 {offsets = [0, 8], sizes = [8, 8], strides = [1, 1]} : vector<8x32xbf16> to vector<8x8xbf16>
    %cst_13 = arith.constant dense<0.000000e+00> : vector<8x8xf32>
    %30 = tpu.matmul %28, %29, %cst_13 {dimension_numbers = #tpu.dot_dimension_numbers<[1], [1], [0], [0], [0, 0, 1, 0], [], []>} : vector<8x8xbf16>, vector<8x8xbf16>, vector<8x8xf32> -> vector<8x8xf32>
    %cst_14 = arith.constant dense<0xFF800000> : vector<8xf32>
    %31 = vector.multi_reduction <maximumf>, %30, %cst_14 [1] : vector<8x8xf32> to vector<8xf32>
    %32 = vector.shape_cast %31 : vector<8xf32> to vector<8x1xf32>
    %33 = vector.broadcast %32 : vector<8x1xf32> to vector<8x8xf32>
    %34 = arith.subf %30, %33 : vector<8x8xf32>
    %35 = math.exp %34 : vector<8x8xf32>
    %cst_15 = arith.constant dense<0.000000e+00> : vector<8xf32>
    %36 = vector.multi_reduction <add>, %35, %cst_15 [1] : vector<8x8xf32> to vector<8xf32>
    %37 = vector.shape_cast %36 : vector<8xf32> to vector<8x1xf32>
    %38 = tpu.reciprocal %37 {approx = true} : vector<8x1xf32> -> vector<8x1xf32>
    %39 = vector.broadcast %38 : vector<8x1xf32> to vector<8x8xf32>
    %40 = arith.mulf %35, %39 : vector<8x8xf32>
    %41 = arith.truncf %40 : vector<8x8xf32> to vector<8x8xbf16>
    %42 = vector.extract_strided_slice %10 {offsets = [0, 8], sizes = [8, 8], strides = [1, 1]} : vector<8x32xbf16> to vector<8x8xbf16>
    %cst_16 = arith.constant dense<0.000000e+00> : vector<8x8xf32>
    %43 = tpu.matmul %41, %42, %cst_16 {dimension_numbers = #tpu.dot_dimension_numbers<[1], [0], [0], [1], [0, 0, 1, 1], [], []>} : vector<8x8xbf16>, vector<8x8xbf16>, vector<8x8xf32> -> vector<8x8xf32>
    %c0_17 = arith.constant 0 : index
    %c8 = arith.constant 8 : index
    %44 = vector.load %arg12[%c0_17, %c8] : memref<8x32xf32, #tpu.memory_space<vmem>>, vector<8x8xf32>
    tpu.vector_store %arg12[%c0_17, %c8], %43 {strides = array<i32>} : memref<8x32xf32, #tpu.memory_space<vmem>>, vector<8x8xf32>,
    %45 = vector.extract_strided_slice %7 {offsets = [0, 16], sizes = [8, 8], strides = [1, 1]} : vector<8x32xbf16> to vector<8x8xbf16>
    %46 = vector.extract_strided_slice %9 {offsets = [0, 16], sizes = [8, 8], strides = [1, 1]} : vector<8x32xbf16> to vector<8x8xbf16>
    %cst_18 = arith.constant dense<0.000000e+00> : vector<8x8xf32>
    %47 = tpu.matmul %45, %46, %cst_18 {dimension_numbers = #tpu.dot_dimension_numbers<[1], [1], [0], [0], [0, 0, 1, 0], [], []>} : vector<8x8xbf16>, vector<8x8xbf16>, vector<8x8xf32> -> vector<8x8xf32>
    %cst_19 = arith.constant dense<0xFF800000> : vector<8xf32>
    %48 = vector.multi_reduction <maximumf>, %47, %cst_19 [1] : vector<8x8xf32> to vector<8xf32>
    %49 = vector.shape_cast %48 : vector<8xf32> to vector<8x1xf32>
    %50 = vector.broadcast %49 : vector<8x1xf32> to vector<8x8xf32>
    %51 = arith.subf %47, %50 : vector<8x8xf32>
    %52 = math.exp %51 : vector<8x8xf32>
    %cst_20 = arith.constant dense<0.000000e+00> : vector<8xf32>
    %53 = vector.multi_reduction <add>, %52, %cst_20 [1] : vector<8x8xf32> to vector<8xf32>
    %54 = vector.shape_cast %53 : vector<8xf32> to vector<8x1xf32>
    %55 = tpu.reciprocal %54 {approx = true} : vector<8x1xf32> -> vector<8x1xf32>
    %56 = vector.broadcast %55 : vector<8x1xf32> to vector<8x8xf32>
    %57 = arith.mulf %52, %56 : vector<8x8xf32>
    %58 = arith.truncf %57 : vector<8x8xf32> to vector<8x8xbf16>
    %59 = vector.extract_strided_slice %10 {offsets = [0, 16], sizes = [8, 8], strides = [1, 1]} : vector<8x32xbf16> to vector<8x8xbf16>
    %cst_21 = arith.constant dense<0.000000e+00> : vector<8x8xf32>
    %60 = tpu.matmul %58, %59, %cst_21 {dimension_numbers = #tpu.dot_dimension_numbers<[1], [0], [0], [1], [0, 0, 1, 1], [], []>} : vector<8x8xbf16>, vector<8x8xbf16>, vector<8x8xf32> -> vector<8x8xf32>
    %c0_22 = arith.constant 0 : index
    %c16 = arith.constant 16 : index
    %61 = vector.load %arg12[%c0_22, %c16] : memref<8x32xf32, #tpu.memory_space<vmem>>, vector<8x8xf32>
    tpu.vector_store %arg12[%c0_22, %c16], %60 {strides = array<i32>} : memref<8x32xf32, #tpu.memory_space<vmem>>, vector<8x8xf32>,
    %62 = vector.extract_strided_slice %7 {offsets = [0, 24], sizes = [8, 8], strides = [1, 1]} : vector<8x32xbf16> to vector<8x8xbf16>
    %63 = vector.extract_strided_slice %9 {offsets = [0, 24], sizes = [8, 8], strides = [1, 1]} : vector<8x32xbf16> to vector<8x8xbf16>
    %cst_23 = arith.constant dense<0.000000e+00> : vector<8x8xf32>
    %64 = tpu.matmul %62, %63, %cst_23 {dimension_numbers = #tpu.dot_dimension_numbers<[1], [1], [0], [0], [0, 0, 1, 0], [], []>} : vector<8x8xbf16>, vector<8x8xbf16>, vector<8x8xf32> -> vector<8x8xf32>
    %cst_24 = arith.constant dense<0xFF800000> : vector<8xf32>
    %65 = vector.multi_reduction <maximumf>, %64, %cst_24 [1] : vector<8x8xf32> to vector<8xf32>
    %66 = vector.shape_cast %65 : vector<8xf32> to vector<8x1xf32>
    %67 = vector.broadcast %66 : vector<8x1xf32> to vector<8x8xf32>
    %68 = arith.subf %64, %67 : vector<8x8xf32>
    %69 = math.exp %68 : vector<8x8xf32>
    %cst_25 = arith.constant dense<0.000000e+00> : vector<8xf32>
    %70 = vector.multi_reduction <add>, %69, %cst_25 [1] : vector<8x8xf32> to vector<8xf32>
    %71 = vector.shape_cast %70 : vector<8xf32> to vector<8x1xf32>
    %72 = tpu.reciprocal %71 {approx = true} : vector<8x1xf32> -> vector<8x1xf32>
    %73 = vector.broadcast %72 : vector<8x1xf32> to vector<8x8xf32>
    %74 = arith.mulf %69, %73 : vector<8x8xf32>
    %75 = arith.truncf %74 : vector<8x8xf32> to vector<8x8xbf16>
    %76 = vector.extract_strided_slice %10 {offsets = [0, 24], sizes = [8, 8], strides = [1, 1]} : vector<8x32xbf16> to vector<8x8xbf16>
    %cst_26 = arith.constant dense<0.000000e+00> : vector<8x8xf32>
    %77 = tpu.matmul %75, %76, %cst_26 {dimension_numbers = #tpu.dot_dimension_numbers<[1], [0], [0], [1], [0, 0, 1, 1], [], []>} : vector<8x8xbf16>, vector<8x8xbf16>, vector<8x8xf32> -> vector<8x8xf32>
    %c0_27 = arith.constant 0 : index
    %c24 = arith.constant 24 : index
    %78 = vector.load %arg12[%c0_27, %c24] : memref<8x32xf32, #tpu.memory_space<vmem>>, vector<8x8xf32>
    tpu.vector_store %arg12[%c0_27, %c24], %77 {strides = array<i32>} : memref<8x32xf32, #tpu.memory_space<vmem>>, vector<8x8xf32>,
    %c0_28 = arith.constant 0 : index
    %c0_29 = arith.constant 0 : index
    %79 = vector.load %arg12[%c0_28, %c0_29] : memref<8x32xf32, #tpu.memory_space<vmem>>, vector<8x32xf32>
    %80 = arith.truncf %79 : vector<8x32xf32> to vector<8x32xbf16>
    %c0_30 = arith.constant 0 : index
    %c0_31 = arith.constant 0 : index
    %81 = vector.load %arg6[%c0_30, %c0_31] : memref<32x32xbf16, #tpu.memory_space<vmem>>, vector<32x32xbf16>
    %cst_32 = arith.constant dense<0.000000e+00> : vector<8x32xf32>
    %82 = tpu.matmul %80, %81, %cst_32 {dimension_numbers = #tpu.dot_dimension_numbers<[1], [0], [0], [1], [0, 0, 1, 1], [], []>} : vector<8x32xbf16>, vector<32x32xbf16>, vector<8x32xf32> -> vector<8x32xf32>
    %c0_33 = arith.constant 0 : index
    %c0_34 = arith.constant 0 : index
    %83 = vector.load %arg7[%c0_33, %c0_34] : memref<1x32xf32, #tpu.memory_space<vmem>>, vector<1x32xf32>
    %84 = vector.broadcast %83 : vector<1x32xf32> to vector<8x32xf32>
    %85 = arith.addf %82, %84 : vector<8x32xf32>
    %86 = arith.extf %1 : vector<8x32xbf16> to vector<8x32xf32>
    %87 = arith.addf %85, %86 : vector<8x32xf32>
    %cst_35 = arith.constant dense<0.000000e+00> : vector<8xf32>
    %88 = vector.multi_reduction <add>, %87, %cst_35 [1] : vector<8x32xf32> to vector<8xf32>
    %89 = vector.shape_cast %88 : vector<8xf32> to vector<8x1xf32>
    %cst_36 = arith.constant 3.200000e+01 : f32
    %90 = vector.broadcast %cst_36 : f32 to vector<8x1xf32>
    %91 = arith.divf %89, %90 : vector<8x1xf32>
    %92 = vector.broadcast %91 : vector<8x1xf32> to vector<8x32xf32>
    %93 = arith.subf %87, %92 : vector<8x32xf32>
    %94 = arith.mulf %93, %93 : vector<8x32xf32>
    %cst_37 = arith.constant dense<0.000000e+00> : vector<8xf32>
    %95 = vector.multi_reduction <add>, %94, %cst_37 [1] : vector<8x32xf32> to vector<8xf32>
    %96 = vector.shape_cast %95 : vector<8xf32> to vector<8x1xf32>
    %cst_38 = arith.constant 3.200000e+01 : f32
    %97 = vector.broadcast %cst_38 : f32 to vector<8x1xf32>
    %98 = arith.divf %96, %97 : vector<8x1xf32>
    %99 = vector.broadcast %91 : vector<8x1xf32> to vector<8x32xf32>
    %100 = arith.subf %87, %99 : vector<8x32xf32>
    %cst_39 = arith.constant 9.99999974E-6 : f32
    %101 = vector.broadcast %cst_39 : f32 to vector<8x1xf32>
    %102 = arith.addf %98, %101 : vector<8x1xf32>
    %103 = math.rsqrt %102 : vector<8x1xf32>
    %104 = vector.broadcast %103 : vector<8x1xf32> to vector<8x32xf32>
    %105 = arith.mulf %100, %104 : vector<8x32xf32>
    %c0_40 = arith.constant 0 : index
    %c0_41 = arith.constant 0 : index
    %106 = vector.load %arg8[%c0_40, %c0_41] : memref<1x32xf32, #tpu.memory_space<vmem>>, vector<1x32xf32>
    %107 = vector.broadcast %106 : vector<1x32xf32> to vector<8x32xf32>
    %108 = arith.mulf %105, %107 : vector<8x32xf32>
    %c0_42 = arith.constant 0 : index
    %c0_43 = arith.constant 0 : index
    %109 = vector.load %arg9[%c0_42, %c0_43] : memref<1x32xf32, #tpu.memory_space<vmem>>, vector<1x32xf32>
    %110 = vector.broadcast %109 : vector<1x32xf32> to vector<8x32xf32>
    %111 = arith.addf %108, %110 : vector<8x32xf32>
    %112 = arith.truncf %111 : vector<8x32xf32> to vector<8x32xbf16>
    %c0_44 = arith.constant 0 : index
    %c0_45 = arith.constant 0 : index
    %c0_46 = arith.constant 0 : index
    %113 = vector.load %arg10[%c0_44, %c0_45, %c0_46] : memref<1x8x32xbf16, #tpu.memory_space<vmem>>, vector<1x8x32xbf16>
    %114 = vector.shape_cast %113 : vector<1x8x32xbf16> to vector<8x32xbf16>
    %115 = vector.shape_cast %112 : vector<8x32xbf16> to vector<1x8x32xbf16>
    tpu.vector_store %arg10[%c0_44, %c0_45, %c0_46], %115 {strides = array<i32>} : memref<1x8x32xbf16, #tpu.memory_space<vmem>>, vector<1x8x32xbf16>,
    return
  }
  func.func @transform_0(%arg0: i32, %arg1: i32) -> (i32, i32, i32) {
    %c0_i32 = arith.constant 0 : i32
    %c0_i32_0 = arith.constant 0 : i32
    return %arg0, %arg1, %c0_i32 : i32, i32, i32
  }
  func.func @transform_1(%arg0: i32, %arg1: i32) -> (i32, i32, i32) {
    %c0_i32 = arith.constant 0 : i32
    %c0_i32_0 = arith.constant 0 : i32
    %c0_i32_1 = arith.constant 0 : i32
    return %arg0, %c0_i32, %c0_i32_0 : i32, i32, i32
  }
  func.func @transform_2(%arg0: i32, %arg1: i32) -> (i32, i32) {
    %c0_i32 = arith.constant 0 : i32
    %c0_i32_0 = arith.constant 0 : i32
    %c0_i32_1 = arith.constant 0 : i32
    return %c0_i32, %c0_i32_0 : i32, i32
  }
  func.func @transform_3(%arg0: i32, %arg1: i32) -> (i32, i32) {
    %c0_i32 = arith.constant 0 : i32
    %c0_i32_0 = arith.constant 0 : i32
    %c0_i32_1 = arith.constant 0 : i32
    return %c0_i32, %c0_i32_0 : i32, i32
  }
  func.func @transform_4(%arg0: i32, %arg1: i32) -> (i32, i32) {
    %c0_i32 = arith.constant 0 : i32
    %c0_i32_0 = arith.constant 0 : i32
    %c0_i32_1 = arith.constant 0 : i32
    return %c0_i32, %c0_i32_0 : i32, i32
  }
  func.func @transform_5(%arg0: i32, %arg1: i32) -> (i32, i32) {
    %c0_i32 = arith.constant 0 : i32
    %c0_i32_0 = arith.constant 0 : i32
    %c0_i32_1 = arith.constant 0 : i32
    return %c0_i32, %c0_i32_0 : i32, i32
  }
  func.func @transform_6(%arg0: i32, %arg1: i32) -> (i32, i32) {
    %c0_i32 = arith.constant 0 : i32
    %c0_i32_0 = arith.constant 0 : i32
    %c0_i32_1 = arith.constant 0 : i32
    return %c0_i32, %c0_i32_0 : i32, i32
  }
  func.func @transform_7(%arg0: i32, %arg1: i32) -> (i32, i32) {
    %c0_i32 = arith.constant 0 : i32
    %c0_i32_0 = arith.constant 0 : i32
    %c0_i32_1 = arith.constant 0 : i32
    return %c0_i32, %c0_i32_0 : i32, i32
  }
  func.func @transform_8(%arg0: i32, %arg1: i32) -> (i32, i32, i32) {
    %c0_i32 = arith.constant 0 : i32
    %c0_i32_0 = arith.constant 0 : i32
    return %arg0, %arg1, %c0_i32 : i32, i32, i32
  }
}

module attributes {stable_mosaic.version = 11 : i64} {
  func.func @_ffn_block_kernel(%arg0: i32, %arg1: memref<16x32xbf16, #tpu.memory_space<vmem>>, %arg2: memref<32x64xbf16, #tpu.memory_space<vmem>>, %arg3: memref<1x64xf32, #tpu.memory_space<vmem>>, %arg4: memref<64x32xbf16, #tpu.memory_space<vmem>>, %arg5: memref<1x32xf32, #tpu.memory_space<vmem>>, %arg6: memref<1x32xf32, #tpu.memory_space<vmem>>, %arg7: memref<1x32xf32, #tpu.memory_space<vmem>>, %arg8: memref<16x32xbf16, #tpu.memory_space<vmem>>) attributes {dimension_semantics = [#tpu.dimension_semantics<parallel>], iteration_bounds = array<i64: 1>, scalar_prefetch = 0 : i64, scratch_operands = 0 : i64, tpu.core_type = #tpu.core_type<tc>, window_params = [{transform_indices = @transform_0, window_bounds = array<i64: 16, 32>}, {pipeline_mode = #tpu.pipeline_mode<synchronous>, transform_indices = @transform_1, window_bounds = array<i64: 32, 64>}, {pipeline_mode = #tpu.pipeline_mode<synchronous>, transform_indices = @transform_2, window_bounds = array<i64: 1, 64>}, {pipeline_mode = #tpu.pipeline_mode<synchronous>, transform_indices = @transform_3, window_bounds = array<i64: 64, 32>}, {pipeline_mode = #tpu.pipeline_mode<synchronous>, transform_indices = @transform_4, window_bounds = array<i64: 1, 32>}, {pipeline_mode = #tpu.pipeline_mode<synchronous>, transform_indices = @transform_5, window_bounds = array<i64: 1, 32>}, {pipeline_mode = #tpu.pipeline_mode<synchronous>, transform_indices = @transform_6, window_bounds = array<i64: 1, 32>}, {transform_indices = @transform_7, window_bounds = array<i64: 16, 32>}]} {
    %c0 = arith.constant 0 : index
    %c0_0 = arith.constant 0 : index
    %0 = vector.load %arg1[%c0, %c0_0] : memref<16x32xbf16, #tpu.memory_space<vmem>>, vector<16x32xbf16>
    %c0_1 = arith.constant 0 : index
    %c0_2 = arith.constant 0 : index
    %1 = vector.load %arg2[%c0_1, %c0_2] : memref<32x64xbf16, #tpu.memory_space<vmem>>, vector<32x64xbf16>
    %cst = arith.constant dense<0.000000e+00> : vector<16x64xf32>
    %2 = tpu.matmul %0, %1, %cst {dimension_numbers = #tpu.dot_dimension_numbers<[1], [0], [0], [1], [0, 0, 1, 1], [], []>} : vector<16x32xbf16>, vector<32x64xbf16>, vector<16x64xf32> -> vector<16x64xf32>
    %c0_3 = arith.constant 0 : index
    %c0_4 = arith.constant 0 : index
    %3 = vector.load %arg3[%c0_3, %c0_4] : memref<1x64xf32, #tpu.memory_space<vmem>>, vector<1x64xf32>
    %4 = vector.broadcast %3 : vector<1x64xf32> to vector<16x64xf32>
    %5 = arith.addf %2, %4 : vector<16x64xf32>
    %cst_5 = arith.constant 0.000000e+00 : f32
    %6 = vector.broadcast %cst_5 : f32 to vector<16x64xf32>
    %7 = arith.maximumf %5, %6 : vector<16x64xf32>
    %8 = arith.truncf %7 : vector<16x64xf32> to vector<16x64xbf16>
    %c0_6 = arith.constant 0 : index
    %c0_7 = arith.constant 0 : index
    %9 = vector.load %arg4[%c0_6, %c0_7] : memref<64x32xbf16, #tpu.memory_space<vmem>>, vector<64x32xbf16>
    %cst_8 = arith.constant dense<0.000000e+00> : vector<16x32xf32>
    %10 = tpu.matmul %8, %9, %cst_8 {dimension_numbers = #tpu.dot_dimension_numbers<[1], [0], [0], [1], [0, 0, 1, 1], [], []>} : vector<16x64xbf16>, vector<64x32xbf16>, vector<16x32xf32> -> vector<16x32xf32>
    %c0_9 = arith.constant 0 : index
    %c0_10 = arith.constant 0 : index
    %11 = vector.load %arg5[%c0_9, %c0_10] : memref<1x32xf32, #tpu.memory_space<vmem>>, vector<1x32xf32>
    %12 = vector.broadcast %11 : vector<1x32xf32> to vector<16x32xf32>
    %13 = arith.addf %10, %12 : vector<16x32xf32>
    %14 = arith.extf %0 : vector<16x32xbf16> to vector<16x32xf32>
    %15 = arith.addf %13, %14 : vector<16x32xf32>
    %cst_11 = arith.constant dense<0.000000e+00> : vector<16xf32>
    %16 = vector.multi_reduction <add>, %15, %cst_11 [1] : vector<16x32xf32> to vector<16xf32>
    %17 = vector.shape_cast %16 : vector<16xf32> to vector<16x1xf32>
    %cst_12 = arith.constant 3.200000e+01 : f32
    %18 = vector.broadcast %cst_12 : f32 to vector<16x1xf32>
    %19 = arith.divf %17, %18 : vector<16x1xf32>
    %20 = vector.broadcast %19 : vector<16x1xf32> to vector<16x32xf32>
    %21 = arith.subf %15, %20 : vector<16x32xf32>
    %22 = arith.mulf %21, %21 : vector<16x32xf32>
    %cst_13 = arith.constant dense<0.000000e+00> : vector<16xf32>
    %23 = vector.multi_reduction <add>, %22, %cst_13 [1] : vector<16x32xf32> to vector<16xf32>
    %24 = vector.shape_cast %23 : vector<16xf32> to vector<16x1xf32>
    %cst_14 = arith.constant 3.200000e+01 : f32
    %25 = vector.broadcast %cst_14 : f32 to vector<16x1xf32>
    %26 = arith.divf %24, %25 : vector<16x1xf32>
    %27 = vector.broadcast %19 : vector<16x1xf32> to vector<16x32xf32>
    %28 = arith.subf %15, %27 : vector<16x32xf32>
    %cst_15 = arith.constant 9.99999974E-6 : f32
    %29 = vector.broadcast %cst_15 : f32 to vector<16x1xf32>
    %30 = arith.addf %26, %29 : vector<16x1xf32>
    %31 = math.rsqrt %30 : vector<16x1xf32>
    %32 = vector.broadcast %31 : vector<16x1xf32> to vector<16x32xf32>
    %33 = arith.mulf %28, %32 : vector<16x32xf32>
    %c0_16 = arith.constant 0 : index
    %c0_17 = arith.constant 0 : index
    %34 = vector.load %arg6[%c0_16, %c0_17] : memref<1x32xf32, #tpu.memory_space<vmem>>, vector<1x32xf32>
    %35 = vector.broadcast %34 : vector<1x32xf32> to vector<16x32xf32>
    %36 = arith.mulf %33, %35 : vector<16x32xf32>
    %c0_18 = arith.constant 0 : index
    %c0_19 = arith.constant 0 : index
    %37 = vector.load %arg7[%c0_18, %c0_19] : memref<1x32xf32, #tpu.memory_space<vmem>>, vector<1x32xf32>
    %38 = vector.broadcast %37 : vector<1x32xf32> to vector<16x32xf32>
    %39 = arith.addf %36, %38 : vector<16x32xf32>
    %40 = arith.truncf %39 : vector<16x32xf32> to vector<16x32xbf16>
    %c0_20 = arith.constant 0 : index
    %c0_21 = arith.constant 0 : index
    %41 = vector.load %arg8[%c0_20, %c0_21] : memref<16x32xbf16, #tpu.memory_space<vmem>>, vector<16x32xbf16>
    tpu.vector_store %arg8[%c0_20, %c0_21], %40 {strides = array<i32>} : memref<16x32xbf16, #tpu.memory_space<vmem>>, vector<16x32xbf16>,
    return
  }
  func.func @transform_0(%arg0: i32) -> (i32, i32) {
    %c0_i32 = arith.constant 0 : i32
    %c0_i32_0 = arith.constant 0 : i32
    return %arg0, %c0_i32 : i32, i32
  }
  func.func @transform_1(%arg0: i32) -> (i32, i32) {
    %c0_i32 = arith.constant 0 : i32
    %c0_i32_0 = arith.constant 0 : i32
    %c0_i32_1 = arith.constant 0 : i32
    return %c0_i32, %c0_i32_0 : i32, i32
  }
  func.func @transform_2(%arg0: i32) -> (i32, i32) {
    %c0_i32 = arith.constant 0 : i32
    %c0_i32_0 = arith.constant 0 : i32
    %c0_i32_1 = arith.constant 0 : i32
    return %c0_i32, %c0_i32_0 : i32, i32
  }
  func.func @transform_3(%arg0: i32) -> (i32, i32) {
    %c0_i32 = arith.constant 0 : i32
    %c0_i32_0 = arith.constant 0 : i32
    %c0_i32_1 = arith.constant 0 : i32
    return %c0_i32, %c0_i32_0 : i32, i32
  }
  func.func @transform_4(%arg0: i32) -> (i32, i32) {
    %c0_i32 = arith.constant 0 : i32
    %c0_i32_0 = arith.constant 0 : i32
    %c0_i32_1 = arith.constant 0 : i32
    return %c0_i32, %c0_i32_0 : i32, i32
  }
  func.func @transform_5(%arg0: i32) -> (i32, i32) {
    %c0_i32 = arith.constant 0 : i32
    %c0_i32_0 = arith.constant 0 : i32
    %c0_i32_1 = arith.constant 0 : i32
    return %c0_i32, %c0_i32_0 : i32, i32
  }
  func.func @transform_6(%arg0: i32) -> (i32, i32) {
    %c0_i32 = arith.constant 0 : i32
    %c0_i32_0 = arith.constant 0 : i32
    %c0_i32_1 = arith.constant 0 : i32
    return %c0_i32, %c0_i32_0 : i32, i32
  }
  func.func @transform_7(%arg0: i32) -> (i32, i32) {
    %c0_i32 = arith.constant 0 : i32
    %c0_i32_0 = arith.constant 0 : i32
    return %arg0, %c0_i32 : i32, i32
  }
}

</mosaic_0001>

<llo_original>
// kernel: encoder_forward.5
$region0: #{encoder_forward.5}
  #allocation0 [shape = 'u32[]', space=smem, size = 0x4, offset = 0x4, fixed_abs, tag = 'smem constant byte address 0x4 - core index']
  #allocation1 [shape = 'u32[144,128]{1,0:T(1,128)}', space=vmem, size = 0x12000, scoped, tag = 'internal scratch']
  %s0 = inlined_call_operand.vmem [shape: f32[16,4], index: 0, kind: input, shape index: {}]
  %s1 = inlined_call_operand.vmem [shape: bf16[4,32], index: 1, kind: input, shape index: {}]
  %s2 = inlined_call_operand.hbm [shape: f32[1,32], index: 2, kind: input, shape index: {}]
  %s3 = inlined_call_operand.vmem [shape: bf16[16,32], index: 3, kind: output, shape index: {}]
  %s4 = sld [smem:[#allocation0]]
  $region26: #{encoder_forward.5} parent=0
    _
  %s6 = ssub.s32 1, %s4
  %s7 = scalar_select 0, %s6, %s4
  $region1: #{encoder_forward.5} parent=0
    #allocation2 [shape = 'u8[512]{0}', space=vmem, size = 0x400, scoped, tag = 'input window, operand 2, single buffered']
    #allocation3 [shape = 's32[1]{0}', space=sflag, size = 0x4, scoped, tag = 'scoped memory for encoder_forward.5']
    %8 = vsyncpa [#allocation3], 0
    // Predicated region
    $region2: #{encoder_forward.5} parent=1 // pred_check
      _
    $region3: #{encoder_forward.5} parent=1 // pred_check_branch
      %10 = sbr.rel (0) target = $region5
    $region4: #{encoder_forward.5} parent=1 // pred_region
      _
    $region5: #{encoder_forward.5} parent=1 // pred_fallthru
      _
    // Predicated region
    $region6: #{encoder_forward.5} parent=1 // pred_check
      _
    $region7: #{encoder_forward.5} parent=1 // pred_check_branch
      %12 = sbr.rel (0) target = $region9
    $region8: #{encoder_forward.5} parent=1 // pred_region
      _
    $region9: #{encoder_forward.5} parent=1 // pred_fallthru
      _
    // Predicated region
    $region10: #{encoder_forward.5} parent=1 // pred_check
      _
    $region11: #{encoder_forward.5} parent=1 // pred_check_branch
      %14 = sbr.rel (0) target = $region13
    $region12: #{encoder_forward.5} parent=1 // pred_region
      %s16 = ssub.s32 16, 16
      %17 = vsyncadd [#allocation3], %s16
      %s19 = sshll.u32 [#allocation2], 4
      %s20 = int_to_ptr.vmem [resolvable:$true] %s19
      %22 = dma.hbm_to_vmem [thread:$0]  %s2, 16, %s20, [#allocation3]
    $region13: #{encoder_forward.5} parent=1 // pred_fallthru
      _
    // Predicated region
    $region14: #{encoder_forward.5} parent=1 // pred_check
      _
    $region15: #{encoder_forward.5} parent=1 // pred_check_branch
      %24 = sbr.rel (0) target = $region17
    $region16: #{encoder_forward.5} parent=1 // pred_region
      %25 = dma.done [#allocation3], 16
    $region17: #{encoder_forward.5} parent=1 // pred_fallthru
      _
    %v27 = vld [vmem:[%s0] sm:$0xff]
    %v28 = vld [vmem:[%s0 + $0x8] sm:$0xff]
    %v29 = vpack.c.bf16 %v28, %v27
    %v30 = vld [vmem:[%s1] sm:$0x3]
    %v31 = vld [vmem:[#allocation2] sm:$0x1]
    %v33 = vlaneseq
    %v34 = vshrl.u32 %v33, 7
    %v35 = vsub.s32 0, %v34
    %v36 = vrot.slane %v31, %v35
    %vm38 = vcmask 31744
    %v40 = vsel %vm38, %v29, 0
    %vm42 = vcmask 1041408
    %v44 = vsel %vm42, %v30, 0
    %46 = vmatprep.subr.bf16.mxu0 0
    %47 = vmatpush1.bf16.msra.mxu0 0
    %48 = vmatprep.subr.bf16.mxu0 0
    %49 = vmatpush1.bf16.msra.mxu0 0
    %50 = vmatprep.subr.bf16.mxu0 0
    %51 = vmatpush1.bf16.msra.mxu0 0
    %52 = vmatprep.subr.bf16.mxu0 0
    %53 = vmatpush1.bf16.msra.mxu0 0
    %54 = vmatprep.subr.bf16.mxu0 0
    %55 = vmatpush1.bf16.msra.mxu0 0
    %56 = vmatprep.subr.bf16.mxu0 0
    %57 = vmatpush1.bf16.msra.mxu0 0
    %58 = vmatprep.subr.bf16.mxu0 0
    %59 = vmatpush1.bf16.msra.mxu0 0
    %60 = vmatprep.subr.bf16.mxu0 0
    %61 = vmatpush1.bf16.msra.mxu0 %v44
    %62 = vmatprep.subr.bf16.mxu0 0
    %63 = vmatpush2.bf16.msra.mxu0 0
    %64 = vmatprep.subr.bf16.mxu0 0
    %65 = vmatpush2.bf16.msra.mxu0 0
    %66 = vmatprep.subr.bf16.mxu0 0
    %67 = vmatpush2.bf16.msra.mxu0 0
    %68 = vmatprep.subr.bf16.mxu0 0
    %69 = vmatpush2.bf16.msra.mxu0 0
    %70 = vmatprep.subr.bf16.mxu0 0
    %71 = vmatpush2.bf16.msra.mxu0 0
    %72 = vmatprep.subr.bf16.mxu0 0
    %73 = vmatpush2.bf16.msra.mxu0 0
    %74 = vmatprep.subr.bf16.mxu0 0
    %75 = vmatpush2.bf16.msra.mxu0 0
    %76 = vmatprep.subr.bf16.mxu0 0
    %77 = vmatpush2.bf16.msra.mxu0 0
    %78 = vmatprep.mubr.bf16.mxu0 0
    %79 = vmatmul.mubr.bf16.gmra.mxu0 %v40
    %v80 = vpop.f32.mrf.mxu0
    %v81 = vadd.f32 %v36, %v80
    %v82 = vpop.f32.mrf.mxu0
    %v83 = vpop.f32.mrf.mxu0
    %v84 = vadd.f32 %v36, %v83
    %v85 = vpop.f32.mrf.mxu0
    %86 = vdwg.mxu0
    %v87 = vpack.c.bf16 %v84, %v81
    %v89 = vunpack.c.l.b16 %v87
    %v90 = vunpack.c.h.b16 %v87
    %v91 = vpack.c.b16 %v89, %v89
    %v92 = vpack.c.b16 %v90, %v90
    %vm95 = vcmask 257024
    %96 = vst.msk [vmem:[%s3] sm:$0xf] %vm95, %v91
    %97 = vst.msk [vmem:[%s3 + $0x4] sm:$0xf] %vm95, %v92
    // Predicated region
    $region18: #{encoder_forward.5} parent=1 // pred_check
      _
    $region19: #{encoder_forward.5} parent=1 // pred_check_branch
      %99 = sbr.rel (0) target = $region21
    $region20: #{encoder_forward.5} parent=1 // pred_region
      _
    $region21: #{encoder_forward.5} parent=1 // pred_fallthru
      _
    // Predicated region
    $region22: #{encoder_forward.5} parent=1 // pred_check
      _
    $region23: #{encoder_forward.5} parent=1 // pred_check_branch
      %101 = sbr.rel (0) target = $region25
    $region24: #{encoder_forward.5} parent=1 // pred_region
      _
    $region25: #{encoder_forward.5} parent=1 // pred_fallthru
      _
    %102 = vsyncpa [#allocation3], 1

// kernel: encoder_forward.6
$region0: #{encoder_forward.6}
  #allocation0 [shape = 'u32[]', space=smem, size = 0x4, offset = 0x4, fixed_abs, tag = 'smem constant byte address 0x4 - core index']
  #allocation1 [shape = 'u32[144,128]{1,0:T(1,128)}', space=vmem, size = 0x12000, scoped, tag = 'internal scratch']
  #allocation2 [shape = 'bf16[8,64]{1,0:T(8,128)(2,1)}', space=vmem, size = 0x800, scoped, tag = 'scratch operand']
  #allocation3 [shape = 'f32[8,32]{1,0:T(8,128)}', space=vmem, size = 0x1000, scoped, tag = 'scratch operand']
  %s0 = inlined_call_operand.vmem [shape: bf16[2,8,32], index: 0, kind: input, shape index: {}, may-alias: {0,1}]
  %s1 = inlined_call_operand.vmem [shape: bf16[2,8,32], index: 1, kind: input, shape index: {}, may-alias: {0,1}]
  %s2 = inlined_call_operand.vmem [shape: bf16[32,32], index: 2, kind: input, shape index: {}]
  %s3 = inlined_call_operand.vmem [shape: bf16[32,64], index: 3, kind: input, shape index: {}]
  %s4 = inlined_call_operand.vmem [shape: bf16[32,32], index: 4, kind: input, shape index: {}]
  %s5 = inlined_call_operand.vmem [shape: f32[1,32], index: 5, kind: input, shape index: {}]
  %s6 = inlined_call_operand.vmem [shape: f32[1,32], index: 6, kind: input, shape index: {}]
  %s7 = inlined_call_operand.vmem [shape: f32[1,32], index: 7, kind: input, shape index: {}]
  %s8 = inlined_call_operand.vmem [shape: bf16[2,8,32], index: 8, kind: output, shape index: {}]
  %s9 = sld [smem:[#allocation0]]
  $region69: #{encoder_forward.6} parent=0
    _
  %s11 = ssub.s32 1, %s9
  %s12 = scalar_select 0, %s11, %s9
  loop: start=0, step=1, limit=4
  $region2: #{encoder_forward.6} parent=0 // loop_pre_header
    _
  $region3: #{encoder_forward.6} parent=0 // loop_header
    %s14 = sphi 0, %s18
    %p15 = scmp.ge.s32.totalorder %s14, 4
    %s21 = sphi 0, %s33
    %s22 = sphi 0, %s29
    %s23 = sphi 0, %s21
    %s24 = sphi 0, %s22
    %s25 = sphi 0, %s23
    %s26 = sphi 0, %s24
    %s38 = sphi 0, %s40
    %s41 = sphi 0, %s38
    %s42 = sphi 0, %s41
    %s58 = sphi 0, %s42
    %s64 = sphi 0, %s66
    %s67 = sphi 0, %s64
    %s68 = sphi 0, %s67
    %s84 = sphi 0, %s68
    %s88 = sphi 0, %s88
    %s90 = sphi 0, %s88
    %s91 = sphi 0, %s90
    %s105 = sphi 0, %s91
    %s109 = sphi 0, %s109
    %s111 = sphi 0, %s109
    %s112 = sphi 0, %s111
    %s126 = sphi 0, %s112
    %s130 = sphi 0, %s130
    %s132 = sphi 0, %s130
    %s133 = sphi 0, %s132
    %s147 = sphi 0, %s133
    %s151 = sphi 0, %s151
    %s153 = sphi 0, %s151
    %s154 = sphi 0, %s153
    %s168 = sphi 0, %s154
    %s172 = sphi 0, %s172
    %s174 = sphi 0, %s172
    %s175 = sphi 0, %s174
    %s189 = sphi 0, %s175
    %s193 = sphi 0, %s193
    %s195 = sphi 0, %s193
    %s196 = sphi 0, %s195
    %s210 = sphi 0, %s196
    %s218 = sphi 0, %s220
    %s221 = sphi 0, %s218
    %s222 = sphi 0, %s221
    %s238 = sphi 0, %s222
  $region4: #{encoder_forward.6} parent=0 // loop_header_branch
    %17 = sbr.rel (%p15) target = $region8
  $region5: #{encoder_forward.6} parent=0 // loop_body
    %s19 = ssub.s32 %s14, 1
    %s20 = ssub.s32 %s14, 2
    %s27 = sadd.s32 1, %s22
    %p28 = scmp.ge.s32.totalorder %s27, 1
    %s29 = scalar_select %p28, 0, %s27
    %s30 = sadd.s32 1, %s21
    %s31 = scalar_select %p28, %s30, %s21
    %p32 = scmp.ge.s32.totalorder %s31, 2
    %s33 = scalar_select %p32, 0, %s31
    %s34 = ssub.s32 %s21, %s33
    %s35 = ssub.s32 %s22, %s29
    %s36 = sor.u32 %s34, %s35
    %p37 = scmp.eq.s32.totalorder %s36, 0
    %s39 = sadd.s32 %s38, 1
    %s40 = scalar_select %p37, %s38, %s39
    %p43 = pneg %p37
    %p44 = scmp.eq.s32.totalorder %s14, 1
    %p45 = por %p43, %p44
    %p46 = scmp.ne.s32.totalorder %s38, %s41
    %p47 = scmp.eq.s32.totalorder %s14, 0
    %p48 = por %p46, %p47
    %p49 = scmp.ne.s32.totalorder %s38, %s41
    %p50 = scmp.eq.s32.totalorder %s19, 1
    %p51 = por %p49, %p50
    %p52 = scmp.ne.s32.totalorder %s41, %s42
    %p53 = scmp.eq.s32.totalorder %s19, 0
    %p54 = por %p52, %p53
    %p55 = scmp.ne.s32.totalorder %s41, %s42
    %p56 = scmp.eq.s32.totalorder %s20, 1
    %p57 = por %p55, %p56
    %p59 = scmp.ne.s32.totalorder %s42, %s58
    %p60 = scmp.eq.s32.totalorder %s20, 0
    %p61 = por %p59, %p60
    %s62 = ssub.s32 %s21, %s33
    %p63 = scmp.eq.s32.totalorder %s62, 0
    %s65 = sadd.s32 %s64, 1
    %s66 = scalar_select %p63, %s64, %s65
    %p69 = pneg %p63
    %p70 = scmp.eq.s32.totalorder %s14, 1
    %p71 = por %p69, %p70
    %p72 = scmp.ne.s32.totalorder %s64, %s67
    %p73 = scmp.eq.s32.totalorder %s14, 0
    %p74 = por %p72, %p73
    %p75 = scmp.ne.s32.totalorder %s64, %s67
    %p76 = scmp.eq.s32.totalorder %s19, 1
    %p77 = por %p75, %p76
    %p78 = scmp.ne.s32.totalorder %s67, %s68
    %p79 = scmp.eq.s32.totalorder %s19, 0
    %p80 = por %p78, %p79
    %p81 = scmp.ne.s32.totalorder %s67, %s68
    %p82 = scmp.eq.s32.totalorder %s20, 1
    %p83 = por %p81, %p82
    %p85 = scmp.ne.s32.totalorder %s68, %s84
    %p86 = scmp.eq.s32.totalorder %s20, 0
    %p87 = por %p85, %p86
    %s89 = sadd.s32 %s88, 1
    %p92 = scmp.eq.s32.totalorder %s14, 1
    %p93 = scmp.ne.s32.totalorder %s88, %s90
    %p94 = scmp.eq.s32.totalorder %s14, 0
    %p95 = por %p93, %p94
    %p96 = scmp.ne.s32.totalorder %s88, %s90
    %p97 = scmp.eq.s32.totalorder %s19, 1
    %p98 = por %p96, %p97
    %p99 = scmp.ne.s32.totalorder %s90, %s91
    %p100 = scmp.eq.s32.totalorder %s19, 0
    %p101 = por %p99, %p100
    %p102 = scmp.ne.s32.totalorder %s90, %s91
    %p103 = scmp.eq.s32.totalorder %s20, 1
    %p104 = por %p102, %p103
    %p106 = scmp.ne.s32.totalorder %s91, %s105
    %p107 = scmp.eq.s32.totalorder %s20, 0
    %p108 = por %p106, %p107
    %s110 = sadd.s32 %s109, 1
    %p113 = scmp.eq.s32.totalorder %s14, 1
    %p114 = scmp.ne.s32.totalorder %s109, %s111
    %p115 = scmp.eq.s32.totalorder %s14, 0
    %p116 = por %p114, %p115
    %p117 = scmp.ne.s32.totalorder %s109, %s111
    %p118 = scmp.eq.s32.totalorder %s19, 1
    %p119 = por %p117, %p118
    %p120 = scmp.ne.s32.totalorder %s111, %s112
    %p121 = scmp.eq.s32.totalorder %s19, 0
    %p122 = por %p120, %p121
    %p123 = scmp.ne.s32.totalorder %s111, %s112
    %p124 = scmp.eq.s32.totalorder %s20, 1
    %p125 = por %p123, %p124
    %p127 = scmp.ne.s32.totalorder %s112, %s126
    %p128 = scmp.eq.s32.totalorder %s20, 0
    %p129 = por %p127, %p128
    %s131 = sadd.s32 %s130, 1
    %p134 = scmp.eq.s32.totalorder %s14, 1
    %p135 = scmp.ne.s32.totalorder %s130, %s132
    %p136 = scmp.eq.s32.totalorder %s14, 0
    %p137 = por %p135, %p136
    %p138 = scmp.ne.s32.totalorder %s130, %s132
    %p139 = scmp.eq.s32.totalorder %s19, 1
    %p140 = por %p138, %p139
    %p141 = scmp.ne.s32.totalorder %s132, %s133
    %p142 = scmp.eq.s32.totalorder %s19, 0
    %p143 = por %p141, %p142
    %p144 = scmp.ne.s32.totalorder %s132, %s133
    %p145 = scmp.eq.s32.totalorder %s20, 1
    %p146 = por %p144, %p145
    %p148 = scmp.ne.s32.totalorder %s133, %s147
    %p149 = scmp.eq.s32.totalorder %s20, 0
    %p150 = por %p148, %p149
    %s152 = sadd.s32 %s151, 1
    %p155 = scmp.eq.s32.totalorder %s14, 1
    %p156 = scmp.ne.s32.totalorder %s151, %s153
    %p157 = scmp.eq.s32.totalorder %s14, 0
    %p158 = por %p156, %p157
    %p159 = scmp.ne.s32.totalorder %s151, %s153
    %p160 = scmp.eq.s32.totalorder %s19, 1
    %p161 = por %p159, %p160
    %p162 = scmp.ne.s32.totalorder %s153, %s154
    %p163 = scmp.eq.s32.totalorder %s19, 0
    %p164 = por %p162, %p163
    %p165 = scmp.ne.s32.totalorder %s153, %s154
    %p166 = scmp.eq.s32.totalorder %s20, 1
    %p167 = por %p165, %p166
    %p169 = scmp.ne.s32.totalorder %s154, %s168
    %p170 = scmp.eq.s32.totalorder %s20, 0
    %p171 = por %p169, %p170
    %s173 = sadd.s32 %s172, 1
    %p176 = scmp.eq.s32.totalorder %s14, 1
    %p177 = scmp.ne.s32.totalorder %s172, %s174
    %p178 = scmp.eq.s32.totalorder %s14, 0
    %p179 = por %p177, %p178
    %p180 = scmp.ne.s32.totalorder %s172, %s174
    %p181 = scmp.eq.s32.totalorder %s19, 1
    %p182 = por %p180, %p181
    %p183 = scmp.ne.s32.totalorder %s174, %s175
    %p184 = scmp.eq.s32.totalorder %s19, 0
    %p185 = por %p183, %p184
    %p186 = scmp.ne.s32.totalorder %s174, %s175
    %p187 = scmp.eq.s32.totalorder %s20, 1
    %p188 = por %p186, %p187
    %p190 = scmp.ne.s32.totalorder %s175, %s189
    %p191 = scmp.eq.s32.totalorder %s20, 0
    %p192 = por %p190, %p191
    %s194 = sadd.s32 %s193, 1
    %p197 = scmp.eq.s32.totalorder %s14, 1
    %p198 = scmp.ne.s32.totalorder %s193, %s195
    %p199 = scmp.eq.s32.totalorder %s14, 0
    %p200 = por %p198, %p199
    %p201 = scmp.ne.s32.totalorder %s193, %s195
    %p202 = scmp.eq.s32.totalorder %s19, 1
    %p203 = por %p201, %p202
    %p204 = scmp.ne.s32.totalorder %s195, %s196
    %p205 = scmp.eq.s32.totalorder %s19, 0
    %p206 = por %p204, %p205
    %p207 = scmp.ne.s32.totalorder %s195, %s196
    %p208 = scmp.eq.s32.totalorder %s20, 1
    %p209 = por %p207, %p208
    %p211 = scmp.ne.s32.totalorder %s196, %s210
    %p212 = scmp.eq.s32.totalorder %s20, 0
    %p213 = por %p211, %p212
    %s214 = ssub.s32 %s21, %s33
    %s215 = ssub.s32 %s22, %s29
    %s216 = sor.u32 %s214, %s215
    %p217 = scmp.eq.s32.totalorder %s216, 0
    %s219 = sadd.s32 %s218, 1
    %s220 = scalar_select %p217, %s218, %s219
    %p223 = pneg %p217
    %p224 = scmp.eq.s32.totalorder %s14, 1
    %p225 = por %p223, %p224
    %p226 = scmp.ne.s32.totalorder %s218, %s221
    %p227 = scmp.eq.s32.totalorder %s14, 0
    %p228 = por %p226, %p227
    %p229 = scmp.ne.s32.totalorder %s218, %s221
    %p230 = scmp.eq.s32.totalorder %s19, 1
    %p231 = por %p229, %p230
    %p232 = scmp.ne.s32.totalorder %s221, %s222
    %p233 = scmp.eq.s32.totalorder %s19, 0
    %p234 = por %p232, %p233
    %p235 = scmp.ne.s32.totalorder %s221, %s222
    %p236 = scmp.eq.s32.totalorder %s20, 1
    %p237 = por %p235, %p236
    %p239 = scmp.ne.s32.totalorder %s222, %s238
    %p240 = scmp.eq.s32.totalorder %s20, 0
    %p241 = por %p239, %p240
    %p242 = scmp.le.s32.totalorder 1, %s14
    %p243 = scmp.lt.s32.totalorder %s14, 3
    %p244 = pnand %p242, %p243
    %p245 = pneg %p244
    // Predicated region
    $region9: #{encoder_forward.6} parent=5 // pred_check
      _
    $region10: #{encoder_forward.6} parent=5 // pred_check_branch
      %247 = sbr.rel (%p244) target = $region12
    $region11: #{encoder_forward.6} parent=5 // pred_region
      %s248 = ssub.s32 %s14, 1
      // Predicated region
      $region13: #{encoder_forward.6} parent=11 // pred_check
        %p249 = pneg %p101
      $region14: #{encoder_forward.6} parent=11 // pred_check_branch
        %251 = sbr.rel (%p249) target = $region16
      $region15: #{encoder_forward.6} parent=11 // pred_region
        _
      $region16: #{encoder_forward.6} parent=11 // pred_fallthru
        _
      // Predicated region
      $region17: #{encoder_forward.6} parent=11 // pred_check
        %p252 = pneg %p122
      $region18: #{encoder_forward.6} parent=11 // pred_check_branch
        %254 = sbr.rel (%p252) target = $region20
      $region19: #{encoder_forward.6} parent=11 // pred_region
        _
      $region20: #{encoder_forward.6} parent=11 // pred_fallthru
        _
      // Predicated region
      $region21: #{encoder_forward.6} parent=11 // pred_check
        %p255 = pneg %p143
      $region22: #{encoder_forward.6} parent=11 // pred_check_branch
        %257 = sbr.rel (%p255) target = $region24
      $region23: #{encoder_forward.6} parent=11 // pred_region
        _
      $region24: #{encoder_forward.6} parent=11 // pred_fallthru
        _
      // Predicated region
      $region25: #{encoder_forward.6} parent=11 // pred_check
        %p258 = pneg %p164
      $region26: #{encoder_forward.6} parent=11 // pred_check_branch
        %260 = sbr.rel (%p258) target = $region28
      $region27: #{encoder_forward.6} parent=11 // pred_region
        _
      $region28: #{encoder_forward.6} parent=11 // pred_fallthru
        _
      // Predicated region
      $region29: #{encoder_forward.6} parent=11 // pred_check
        %p261 = pneg %p185
      $region30: #{encoder_forward.6} parent=11 // pred_check_branch
        %263 = sbr.rel (%p261) target = $region32
      $region31: #{encoder_forward.6} parent=11 // pred_region
        _
      $region32: #{encoder_forward.6} parent=11 // pred_fallthru
        _
      // Predicated region
      $region33: #{encoder_forward.6} parent=11 // pred_check
        %p264 = pneg %p206
      $region34: #{encoder_forward.6} parent=11 // pred_check_branch
        %266 = sbr.rel (%p264) target = $region36
      $region35: #{encoder_forward.6} parent=11 // pred_region
        _
      $region36: #{encoder_forward.6} parent=11 // pred_fallthru
        _
    $region12: #{encoder_forward.6} parent=5 // pred_fallthru
      _
    %p267 = scmp.lt.s32.totalorder %s14, 2
    // Predicated region
    $region37: #{encoder_forward.6} parent=5 // pred_check
      %p268 = pneg %p267
    $region38: #{encoder_forward.6} parent=5 // pred_check_branch
      %270 = sbr.rel (%p268) target = $region40
    $region39: #{encoder_forward.6} parent=5 // pred_region
      // Predicated region
      $region41: #{encoder_forward.6} parent=39 // pred_check
        %p271 = pneg %p48
      $region42: #{encoder_forward.6} parent=39 // pred_check_branch
        %273 = sbr.rel (%p271) target = $region44
      $region43: #{encoder_forward.6} parent=39 // pred_region
        %p274 = scmp.lt.s32.totalorder %s21, 1
        %s275 = scalar_select %p274, %s21, 1
        %p276 = scmp.lt.s32.totalorder %s22, 0
        %s277 = scalar_select %p276, %s22, 0
        %s278 = sadd.s32 %s277, %s275
        %s279 = smul.addr %s278, 4
        %s280 = scalar_lea.vmem %s0, %s279
      $region44: #{encoder_forward.6} parent=39 // pred_fallthru
        _
      // Predicated region
      $region45: #{encoder_forward.6} parent=39 // pred_check
        %p281 = pneg %p74
      $region46: #{encoder_forward.6} parent=39 // pred_check_branch
        %283 = sbr.rel (%p281) target = $region48
      $region47: #{encoder_forward.6} parent=39 // pred_region
        %p284 = scmp.lt.s32.totalorder %s21, 1
        %s285 = scalar_select %p284, %s21, 1
        %s286 = smul.addr %s285, 4
        %s287 = scalar_lea.vmem %s1, %s286
      $region48: #{encoder_forward.6} parent=39 // pred_fallthru
        _
    $region40: #{encoder_forward.6} parent=5 // pred_fallthru
      _
    %p288 = scmp.le.s32.totalorder 1, %s14
    %p289 = scmp.lt.s32.totalorder %s14, 3
    %p290 = pnand %p288, %p289
    %p291 = pneg %p290
    // Predicated region
    $region49: #{encoder_forward.6} parent=5 // pred_check
      _
    $region50: #{encoder_forward.6} parent=5 // pred_check_branch
      %293 = sbr.rel (%p290) target = $region52
    $region51: #{encoder_forward.6} parent=5 // pred_region
      %s294 = ssub.s32 %s14, 1
      %p295 = scmp.lt.s32.totalorder %s23, 1
      %s296 = scalar_select %p295, %s23, 1
      %p297 = scmp.lt.s32.totalorder %s24, 0
      %s298 = scalar_select %p297, %s24, 0
      %s299 = sadd.s32 %s298, %s296
      %s300 = smul.addr %s299, 4
      %s301 = scalar_lea.vmem %s0, %s300
      %p302 = pneg %p54
      %p303 = pneg %p51
      %p304 = scmp.lt.s32.totalorder %s23, 1
      %s305 = scalar_select %p304, %s23, 1
      %s306 = smul.addr %s305, 4
      %s307 = scalar_lea.vmem %s1, %s306
      %p308 = pneg %p80
      %p309 = pneg %p77
      %p310 = pneg %p101
      %p311 = pneg %p98
      %p312 = pneg %p122
      %p313 = pneg %p119
      %p314 = pneg %p143
      %p315 = pneg %p140
      %p316 = pneg %p164
      %p317 = pneg %p161
      %p318 = pneg %p185
      %p319 = pneg %p182
      %p320 = pneg %p206
      %p321 = pneg %p203
      %p322 = pneg %p234
      %p323 = pneg %p231
      %p324 = scmp.lt.s32.totalorder %s23, 1
      %s325 = scalar_select %p324, %s23, 1
      %p326 = scmp.lt.s32.totalorder %s24, 0
      %s327 = scalar_select %p326, %s24, 0
      %s328 = sadd.s32 %s327, %s325
      %s329 = smul.addr %s328, 4
      %s330 = scalar_lea.vmem %s8, %s329
      %p331 = scmp.lt.s32.totalorder %s23, 1
      %s332 = scalar_select %p331, %s23, 1
      %p333 = scmp.lt.s32.totalorder %s24, 0
      %s334 = scalar_select %p333, %s24, 0
      %s335 = sadd.s32 %s334, %s332
      %s336 = smul.addr %s335, 4
      %s337 = scalar_lea.vmem %s0, %s336
      %p338 = scmp.lt.s32.totalorder %s23, 1
      %s339 = scalar_select %p338, %s23, 1
      %s340 = smul.addr %s339, 4
      %s341 = scalar_lea.vmem %s1, %s340
      %p342 = scmp.lt.s32.totalorder %s23, 1
      %s343 = scalar_select %p342, %s23, 1
      %p344 = scmp.lt.s32.totalorder %s24, 0
      %s345 = scalar_select %p344, %s24, 0
      %s346 = sadd.s32 %s345, %s343
      %s347 = smul.addr %s346, 4
      %s348 = scalar_lea.vmem %s8, %s347
      %v350 = vld [vmem:[%s337] sm:$0xf]
      %p351 = scmp.eq.s32.totalorder %s24, 0
      // Predicated region
      $region53: #{encoder_forward.6} parent=51 // pred_check
        %p352 = pneg %p351
      $region54: #{encoder_forward.6} parent=51 // pred_check_branch
        %354 = sbr.rel (%p352) target = $region56
      $region55: #{encoder_forward.6} parent=51 // pred_region
        %v355 = vld [vmem:[%s341] sm:$0xf]
        %v356 = vld [vmem:[%s3] sm:$0xf]
        %v357 = vld [vmem:[%s3 + $0x4] sm:$0xf]
        %v358 = vld [vmem:[%s3 + $0x8] sm:$0xf]
        %v359 = vld [vmem:[%s3 + $0xc] sm:$0xf]
        %v364 = vunpack.c.l.b16 %v356
        %v365 = vunpack.c.l.b16 %v357
        %v366 = vunpack.c.l.b16 %v358
        %v367 = vunpack.c.l.b16 %v359
        %v368 = vpack.c.b16 %v365, %v364
        %v369 = vpack.c.b16 %v367, %v366
        %vm372 = vcmask 261120
        %v374 = vsel %vm372, %v355, 0
        %376 = vmatprep.subr.bf16.mxu0 0
        %377 = vmatpush1.bf16.msra.mxu0 0
        %378 = vmatprep.subr.bf16.mxu0 0
        %379 = vmatpush1.bf16.msra.mxu0 0
        %380 = vmatprep.subr.bf16.mxu0 0
        %381 = vmatpush1.bf16.msra.mxu0 0
        %382 = vmatprep.subr.bf16.mxu0 0
        %383 = vmatpush1.bf16.msra.mxu0 0
        %384 = vmatprep.subr.bf16.mxu0 0
        %385 = vmatpush1.bf16.msra.mxu0 0
        %386 = vmatprep.subr.bf16.mxu0 0
        %387 = vmatpush1.bf16.msra.mxu0 0
        %388 = vmatprep.subr.bf16.mxu0 0
        %389 = vmatpush1.bf16.msra.mxu0 %v369
        %390 = vmatprep.subr.bf16.mxu0 0
        %391 = vmatpush1.bf16.msra.mxu0 %v368
        %392 = vmatprep.subr.bf16.mxu0 0
        %393 = vmatpush2.bf16.msra.mxu0 0
        %394 = vmatprep.subr.bf16.mxu0 0
        %395 = vmatpush2.bf16.msra.mxu0 0
        %396 = vmatprep.subr.bf16.mxu0 0
        %397 = vmatpush2.bf16.msra.mxu0 0
        %398 = vmatprep.subr.bf16.mxu0 0
        %399 = vmatpush2.bf16.msra.mxu0 0
        %400 = vmatprep.subr.bf16.mxu0 0
        %401 = vmatpush2.bf16.msra.mxu0 0
        %402 = vmatprep.subr.bf16.mxu0 0
        %403 = vmatpush2.bf16.msra.mxu0 0
        %404 = vmatprep.subr.bf16.mxu0 0
        %405 = vmatpush2.bf16.msra.mxu0 0
        %406 = vmatprep.subr.bf16.mxu0 0
        %407 = vmatpush2.bf16.msra.mxu0 0
        %408 = vmatprep.mubr.bf16.mxu0 0
        %409 = vmatmul.mubr.bf16.gmra.mxu0 %v374
        %v410 = vpop.f32.mrf.mxu0
        %v411 = vadd.f32 0.0, %v410
        %v412 = vpop.f32.mrf.mxu0
        %v413 = vpop.f32.mrf.mxu0
        %v414 = vpop.f32.mrf.mxu0
        %415 = vdwg.mxu0
        %v416 = vpack.c.bf16 %v411, %v411
        %vm417 = vcmask 519168
        %418 = vst.msk [vmem:[#allocation2] sm:$0xf] %vm417, %v416
      $region56: #{encoder_forward.6} parent=51 // pred_fallthru
        _
      %v419 = vld [vmem:[%s2] sm:$0xf]
      %v420 = vld [vmem:[%s2 + $0x4] sm:$0xf]
      %v421 = vld [vmem:[%s2 + $0x8] sm:$0xf]
      %v422 = vld [vmem:[%s2 + $0xc] sm:$0xf]
      %v427 = vunpack.c.l.b16 %v419
      %v428 = vunpack.c.l.b16 %v420
      %v429 = vunpack.c.l.b16 %v421
      %v430 = vunpack.c.l.b16 %v422
      %v431 = vpack.c.b16 %v428, %v427
      %v432 = vpack.c.b16 %v430, %v429
      %vm435 = vcmask 261120
      %v437 = vsel %vm435, %v350, 0
      %439 = vmatprep.subr.bf16.mxu0 0
      %440 = vmatpush1.bf16.msra.mxu0 0
      %441 = vmatprep.subr.bf16.mxu0 0
      %442 = vmatpush1.bf16.msra.mxu0 0
      %443 = vmatprep.subr.bf16.mxu0 0
      %444 = vmatpush1.bf16.msra.mxu0 0
      %445 = vmatprep.subr.bf16.mxu0 0
      %446 = vmatpush1.bf16.msra.mxu0 0
      %447 = vmatprep.subr.bf16.mxu0 0
      %448 = vmatpush1.bf16.msra.mxu0 0
      %449 = vmatprep.subr.bf16.mxu0 0
      %450 = vmatpush1.bf16.msra.mxu0 0
      %451 = vmatprep.subr.bf16.mxu0 0
      %452 = vmatpush1.bf16.msra.mxu0 %v432
      %453 = vmatprep.subr.bf16.mxu0 0
      %454 = vmatpush1.bf16.msra.mxu0 %v431
      %455 = vmatprep.subr.bf16.mxu0 0
      %456 = vmatpush2.bf16.msra.mxu0 0
      %457 = vmatprep.subr.bf16.mxu0 0
      %458 = vmatpush2.bf16.msra.mxu0 0
      %459 = vmatprep.subr.bf16.mxu0 0
      %460 = vmatpush2.bf16.msra.mxu0 0
      %461 = vmatprep.subr.bf16.mxu0 0
      %462 = vmatpush2.bf16.msra.mxu0 0
      %463 = vmatprep.subr.bf16.mxu0 0
      %464 = vmatpush2.bf16.msra.mxu0 0
      %465 = vmatprep.subr.bf16.mxu0 0
      %466 = vmatpush2.bf16.msra.mxu0 0
      %467 = vmatprep.subr.bf16.mxu0 0
      %468 = vmatpush2.bf16.msra.mxu0 0
      %469 = vmatprep.subr.bf16.mxu0 0
      %470 = vmatpush2.bf16.msra.mxu0 0
      %471 = vmatprep.mubr.bf16.mxu0 0
      %472 = vmatmul.mubr.bf16.gmra.mxu0 %v437
      %v473 = vpop.f32.mrf.mxu0
      %v474 = vadd.f32 0.0, %v473
      %v475 = vpop.f32.mrf.mxu0
      %v476 = vpop.f32.mrf.mxu0
      %v477 = vpop.f32.mrf.mxu0
      %478 = vdwg.mxu0
      %v479 = vpack.c.bf16 %v474, %v474
      %v480 = vld [vmem:[#allocation2] sm:$0xf]
      %vm481 = vcmask 64512
      %v483 = vsel %vm481, %v479, 0
      %v486 = vsel %vm481, %v480, 0
      %488 = vmatprep.subr.bf16.mxu0 0
      %489 = vmatpush1.bf16.xpose.msra.mxu0 0
      %490 = vmatprep.subr.bf16.mxu0 0
      %491 = vmatpush1.bf16.xpose.msra.mxu0 0
      %492 = vmatprep.subr.bf16.mxu0 0
      %493 = vmatpush1.bf16.xpose.msra.mxu0 0
      %494 = vmatprep.subr.bf16.mxu0 0
      %495 = vmatpush1.bf16.xpose.msra.mxu0 0
      %496 = vmatprep.subr.bf16.mxu0 0
      %497 = vmatpush1.bf16.xpose.msra.mxu0 0
      %498 = vmatprep.subr.bf16.mxu0 0
      %499 = vmatpush1.bf16.xpose.msra.mxu0 0
      %500 = vmatprep.subr.bf16.mxu0 0
      %501 = vmatpush1.bf16.xpose.msra.mxu0 0
      %502 = vmatprep.subr.bf16.mxu0 0
      %503 = vmatpush1.bf16.xpose.msra.mxu0 %v486
      %504 = vmatprep.subr.bf16.mxu0 0
      %505 = vmatpush2.bf16.xpose.msra.mxu0 0
      %506 = vmatprep.subr.bf16.mxu0 0
      %507 = vmatpush2.bf16.xpose.msra.mxu0 0
      %508 = vmatprep.subr.bf16.mxu0 0
      %509 = vmatpush2.bf16.xpose.msra.mxu0 0
      %510 = vmatprep.subr.bf16.mxu0 0
      %511 = vmatpush2.bf16.xpose.msra.mxu0 0
      %512 = vmatprep.subr.bf16.mxu0 0
      %513 = vmatpush2.bf16.xpose.msra.mxu0 0
      %514 = vmatprep.subr.bf16.mxu0 0
      %515 = vmatpush2.bf16.xpose.msra.mxu0 0
      %516 = vmatprep.subr.bf16.mxu0 0
      %517 = vmatpush2.bf16.xpose.msra.mxu0 0
      %518 = vmatprep.subr.bf16.mxu0 0
      %519 = vmatpush2.bf16.xpose.msra.mxu0 0
      %520 = vmatprep.mubr.bf16.mxu0 0
      %521 = vmatmul.mubr.bf16.gmra.mxu0 %v483
      %v522 = vpop.f32.mrf.mxu0
      %v523 = vadd.f32 0.0, %v522
      %v524 = vpop.f32.mrf.mxu0
      %v525 = vpop.f32.mrf.mxu0
      %v526 = vpop.f32.mrf.mxu0
      %527 = vdwg.mxu0
      %v528 = vsel %vm481, %v523, -inf
      %529 = vmax.xlane.f32.xlu0 %v528
      %v530 = vpop.xlane.xlu0 %529
      %v531 = vsub.f32 %v523, %v530
      %v532 = vmul.f32 %v531, 1.442695
      %v533 = vpow.pop %v532
      %v534 = vsel %vm481, %v533, 0.0
      %535 = vadd.xlane.f32.xlu0 %v534
      %v536 = vpop.xlane.xlu0 %535
      %v537 = vrcp.pop %v536
      %v538 = vmul.f32 %v533, %v537
      %v539 = vpack.c.bf16 %v538, %v538
      %v541 = vunpack.c.l.b16 %v480
      %v542 = vpack.c.b16 %v541, %v541
      %543 = vrot.lane.b32.xlu0 %v542, 96
      %v544 = vpop.permute.xlu0 %543
      %v546 = vsel %vm481, %v539, 0
      %vm548 = vcmask 1043456
      %v550 = vsel %vm548, %v544, 0
      %552 = vmatprep.subr.bf16.mxu0 0
      %553 = vmatpush1.bf16.msra.mxu0 0
      %554 = vmatprep.subr.bf16.mxu0 0
      %555 = vmatpush1.bf16.msra.mxu0 0
      %556 = vmatprep.subr.bf16.mxu0 0
      %557 = vmatpush1.bf16.msra.mxu0 0
      %558 = vmatprep.subr.bf16.mxu0 0
      %559 = vmatpush1.bf16.msra.mxu0 0
      %560 = vmatprep.subr.bf16.mxu0 0
      %561 = vmatpush1.bf16.msra.mxu0 0
      %562 = vmatprep.subr.bf16.mxu0 0
      %563 = vmatpush1.bf16.msra.mxu0 0
      %564 = vmatprep.subr.bf16.mxu0 0
      %565 = vmatpush1.bf16.msra.mxu0 0
      %566 = vmatprep.subr.bf16.mxu0 0
      %567 = vmatpush1.bf16.msra.mxu0 %v550
      %568 = vmatprep.subr.bf16.mxu0 0
      %569 = vmatpush2.bf16.msra.mxu0 0
      %570 = vmatprep.subr.bf16.mxu0 0
      %571 = vmatpush2.bf16.msra.mxu0 0
      %572 = vmatprep.subr.bf16.mxu0 0
      %573 = vmatpush2.bf16.msra.mxu0 0
      %574 = vmatprep.subr.bf16.mxu0 0
      %575 = vmatpush2.bf16.msra.mxu0 0
      %576 = vmatprep.subr.bf16.mxu0 0
      %577 = vmatpush2.bf16.msra.mxu0 0
      %578 = vmatprep.subr.bf16.mxu0 0
      %579 = vmatpush2.bf16.msra.mxu0 0
      %580 = vmatprep.subr.bf16.mxu0 0
      %581 = vmatpush2.bf16.msra.mxu0 0
      %582 = vmatprep.subr.bf16.mxu0 0
      %583 = vmatpush2.bf16.msra.mxu0 0
      %584 = vmatprep.mubr.bf16.mxu0 0
      %585 = vmatmul.mubr.bf16.gmra.mxu0 %v546
      %v586 = vpop.f32.mrf.mxu0
      %v587 = vadd.f32 0.0, %v586
      %v588 = vpop.f32.mrf.mxu0
      %v589 = vpop.f32.mrf.mxu0
      %v590 = vpop.f32.mrf.mxu0
      %591 = vdwg.mxu0
      %592 = vst.msk [vmem:[#allocation3] sm:$0xff] %vm481, %v587
      %594 = vrot.lane.b32.xlu0 %v479, 120
      %v595 = vpop.permute.xlu0 %594
      %596 = vrot.lane.b32.xlu0 %v542, 120
      %v597 = vpop.permute.xlu0 %596
      %v599 = vsel %vm481, %v595, 0
      %v602 = vsel %vm481, %v597, 0
      %604 = vmatprep.subr.bf16.mxu0 0
      %605 = vmatpush1.bf16.xpose.msra.mxu0 0
      %606 = vmatprep.subr.bf16.mxu0 0
      %607 = vmatpush1.bf16.xpose.msra.mxu0 0
      %608 = vmatprep.subr.bf16.mxu0 0
      %609 = vmatpush1.bf16.xpose.msra.mxu0 0
      %610 = vmatprep.subr.bf16.mxu0 0
      %611 = vmatpush1.bf16.xpose.msra.mxu0 0
      %612 = vmatprep.subr.bf16.mxu0 0
      %613 = vmatpush1.bf16.xpose.msra.mxu0 0
      %614 = vmatprep.subr.bf16.mxu0 0
      %615 = vmatpush1.bf16.xpose.msra.mxu0 0
      %616 = vmatprep.subr.bf16.mxu0 0
      %617 = vmatpush1.bf16.xpose.msra.mxu0 0
      %618 = vmatprep.subr.bf16.mxu0 0
      %619 = vmatpush1.bf16.xpose.msra.mxu0 %v602
      %620 = vmatprep.subr.bf16.mxu0 0
      %621 = vmatpush2.bf16.xpose.msra.mxu0 0
      %622 = vmatprep.subr.bf16.mxu0 0
      %623 = vmatpush2.bf16.xpose.msra.mxu0 0
      %624 = vmatprep.subr.bf16.mxu0 0
      %625 = vmatpush2.bf16.xpose.msra.mxu0 0
      %626 = vmatprep.subr.bf16.mxu0 0
      %627 = vmatpush2.bf16.xpose.msra.mxu0 0
      %628 = vmatprep.subr.bf16.mxu0 0
      %629 = vmatpush2.bf16.xpose.msra.mxu0 0
      %630 = vmatprep.subr.bf16.mxu0 0
      %631 = vmatpush2.bf16.xpose.msra.mxu0 0
      %632 = vmatprep.subr.bf16.mxu0 0
      %633 = vmatpush2.bf16.xpose.msra.mxu0 0
      %634 = vmatprep.subr.bf16.mxu0 0
      %635 = vmatpush2.bf16.xpose.msra.mxu0 0
      %636 = vmatprep.mubr.bf16.mxu0 0
      %637 = vmatmul.mubr.bf16.gmra.mxu0 %v599
      %v638 = vpop.f32.mrf.mxu0
      %v639 = vadd.f32 0.0, %v638
      %v640 = vpop.f32.mrf.mxu0
      %v641 = vpop.f32.mrf.mxu0
      %v642 = vpop.f32.mrf.mxu0
      %643 = vdwg.mxu0
      %v644 = vsel %vm481, %v639, -inf
      %645 = vmax.xlane.f32.xlu0 %v644
      %v646 = vpop.xlane.xlu0 %645
      %v647 = vsub.f32 %v639, %v646
      %v648 = vmul.f32 %v647, 1.442695
      %v649 = vpow.pop %v648
      %v650 = vsel %vm481, %v649, 0.0
      %651 = vadd.xlane.f32.xlu0 %v650
      %v652 = vpop.xlane.xlu0 %651
      %v653 = vrcp.pop %v652
      %v654 = vmul.f32 %v649, %v653
      %v655 = vpack.c.bf16 %v654, %v654
      %656 = vrot.lane.b32.xlu0 %v542, 88
      %v657 = vpop.permute.xlu0 %656
      %v659 = vsel %vm481, %v655, 0
      %v662 = vsel %vm548, %v657, 0
      %664 = vmatprep.subr.bf16.mxu0 0
      %665 = vmatpush1.bf16.msra.mxu0 0
      %666 = vmatprep.subr.bf16.mxu0 0
      %667 = vmatpush1.bf16.msra.mxu0 0
      %668 = vmatprep.subr.bf16.mxu0 0
      %669 = vmatpush1.bf16.msra.mxu0 0
      %670 = vmatprep.subr.bf16.mxu0 0
      %671 = vmatpush1.bf16.msra.mxu0 0
      %672 = vmatprep.subr.bf16.mxu0 0
      %673 = vmatpush1.bf16.msra.mxu0 0
      %674 = vmatprep.subr.bf16.mxu0 0
      %675 = vmatpush1.bf16.msra.mxu0 0
      %676 = vmatprep.subr.bf16.mxu0 0
      %677 = vmatpush1.bf16.msra.mxu0 0
      %678 = vmatprep.subr.bf16.mxu0 0
      %679 = vmatpush1.bf16.msra.mxu0 %v662
      %680 = vmatprep.subr.bf16.mxu0 0
      %681 = vmatpush2.bf16.msra.mxu0 0
      %682 = vmatprep.subr.bf16.mxu0 0
      %683 = vmatpush2.bf16.msra.mxu0 0
      %684 = vmatprep.subr.bf16.mxu0 0
      %685 = vmatpush2.bf16.msra.mxu0 0
      %686 = vmatprep.subr.bf16.mxu0 0
      %687 = vmatpush2.bf16.msra.mxu0 0
      %688 = vmatprep.subr.bf16.mxu0 0
      %689 = vmatpush2.bf16.msra.mxu0 0
      %690 = vmatprep.subr.bf16.mxu0 0
      %691 = vmatpush2.bf16.msra.mxu0 0
      %692 = vmatprep.subr.bf16.mxu0 0
      %693 = vmatpush2.bf16.msra.mxu0 0
      %694 = vmatprep.subr.bf16.mxu0 0
      %695 = vmatpush2.bf16.msra.mxu0 0
      %696 = vmatprep.mubr.bf16.mxu0 0
      %697 = vmatmul.mubr.bf16.gmra.mxu0 %v659
      %v698 = vpop.f32.mrf.mxu0
      %v699 = vadd.f32 0.0, %v698
      %v700 = vpop.f32.mrf.mxu0
      %v701 = vpop.f32.mrf.mxu0
      %v702 = vpop.f32.mrf.mxu0
      %703 = vdwg.mxu0
      %705 = vrot.lane.b32.xlu0 %v699, 8
      %v706 = vpop.permute.xlu0 %705
      %vm708 = vcmask 130112
      %709 = vst.msk [vmem:[#allocation3] sm:$0xff] %vm708, %v706
      %710 = vrot.lane.b32.xlu0 %v479, 112
      %v711 = vpop.permute.xlu0 %710
      %712 = vrot.lane.b32.xlu0 %v542, 112
      %v713 = vpop.permute.xlu0 %712
      %v715 = vsel %vm481, %v711, 0
      %v718 = vsel %vm481, %v713, 0
      %720 = vmatprep.subr.bf16.mxu0 0
      %721 = vmatpush1.bf16.xpose.msra.mxu0 0
      %722 = vmatprep.subr.bf16.mxu0 0
      %723 = vmatpush1.bf16.xpose.msra.mxu0 0
      %724 = vmatprep.subr.bf16.mxu0 0
      %725 = vmatpush1.bf16.xpose.msra.mxu0 0
      %726 = vmatprep.subr.bf16.mxu0 0
      %727 = vmatpush1.bf16.xpose.msra.mxu0 0
      %728 = vmatprep.subr.bf16.mxu0 0
      %729 = vmatpush1.bf16.xpose.msra.mxu0 0
      %730 = vmatprep.subr.bf16.mxu0 0
      %731 = vmatpush1.bf16.xpose.msra.mxu0 0
      %732 = vmatprep.subr.bf16.mxu0 0
      %733 = vmatpush1.bf16.xpose.msra.mxu0 0
      %734 = vmatprep.subr.bf16.mxu0 0
      %735 = vmatpush1.bf16.xpose.msra.mxu0 %v718
      %736 = vmatprep.subr.bf16.mxu0 0
      %737 = vmatpush2.bf16.xpose.msra.mxu0 0
      %738 = vmatprep.subr.bf16.mxu0 0
      %739 = vmatpush2.bf16.xpose.msra.mxu0 0
      %740 = vmatprep.subr.bf16.mxu0 0
      %741 = vmatpush2.bf16.xpose.msra.mxu0 0
      %742 = vmatprep.subr.bf16.mxu0 0
      %743 = vmatpush2.bf16.xpose.msra.mxu0 0
      %744 = vmatprep.subr.bf16.mxu0 0
      %745 = vmatpush2.bf16.xpose.msra.mxu0 0
      %746 = vmatprep.subr.bf16.mxu0 0
      %747 = vmatpush2.bf16.xpose.msra.mxu0 0
      %748 = vmatprep.subr.bf16.mxu0 0
      %749 = vmatpush2.bf16.xpose.msra.mxu0 0
      %750 = vmatprep.subr.bf16.mxu0 0
      %751 = vmatpush2.bf16.xpose.msra.mxu0 0
      %752 = vmatprep.mubr.bf16.mxu0 0
      %753 = vmatmul.mubr.bf16.gmra.mxu0 %v715
      %v754 = vpop.f32.mrf.mxu0
      %v755 = vadd.f32 0.0, %v754
      %v756 = vpop.f32.mrf.mxu0
      %v757 = vpop.f32.mrf.mxu0
      %v758 = vpop.f32.mrf.mxu0
      %759 = vdwg.mxu0
      %v760 = vsel %vm481, %v755, -inf
      %761 = vmax.xlane.f32.xlu0 %v760
      %v762 = vpop.xlane.xlu0 %761
      %v763 = vsub.f32 %v755, %v762
      %v764 = vmul.f32 %v763, 1.442695
      %v765 = vpow.pop %v764
      %v766 = vsel %vm481, %v765, 0.0
      %767 = vadd.xlane.f32.xlu0 %v766
      %v768 = vpop.xlane.xlu0 %767
      %v769 = vrcp.pop %v768
      %v770 = vmul.f32 %v765, %v769
      %v771 = vpack.c.bf16 %v770, %v770
      %772 = vrot.lane.b32.xlu0 %v542, 80
      %v773 = vpop.permute.xlu0 %772
      %v775 = vsel %vm481, %v771, 0
      %v778 = vsel %vm548, %v773, 0
      %780 = vmatprep.subr.bf16.mxu0 0
      %781 = vmatpush1.bf16.msra.mxu0 0
      %782 = vmatprep.subr.bf16.mxu0 0
      %783 = vmatpush1.bf16.msra.mxu0 0
      %784 = vmatprep.subr.bf16.mxu0 0
      %785 = vmatpush1.bf16.msra.mxu0 0
      %786 = vmatprep.subr.bf16.mxu0 0
      %787 = vmatpush1.bf16.msra.mxu0 0
      %788 = vmatprep.subr.bf16.mxu0 0
      %789 = vmatpush1.bf16.msra.mxu0 0
      %790 = vmatprep.subr.bf16.mxu0 0
      %791 = vmatpush1.bf16.msra.mxu0 0
      %792 = vmatprep.subr.bf16.mxu0 0
      %793 = vmatpush1.bf16.msra.mxu0 0
      %794 = vmatprep.subr.bf16.mxu0 0
      %795 = vmatpush1.bf16.msra.mxu0 %v778
      %796 = vmatprep.subr.bf16.mxu0 0
      %797 = vmatpush2.bf16.msra.mxu0 0
      %798 = vmatprep.subr.bf16.mxu0 0
      %799 = vmatpush2.bf16.msra.mxu0 0
      %800 = vmatprep.subr.bf16.mxu0 0
      %801 = vmatpush2.bf16.msra.mxu0 0
      %802 = vmatprep.subr.bf16.mxu0 0
      %803 = vmatpush2.bf16.msra.mxu0 0
      %804 = vmatprep.subr.bf16.mxu0 0
      %805 = vmatpush2.bf16.msra.mxu0 0
      %806 = vmatprep.subr.bf16.mxu0 0
      %807 = vmatpush2.bf16.msra.mxu0 0
      %808 = vmatprep.subr.bf16.mxu0 0
      %809 = vmatpush2.bf16.msra.mxu0 0
      %810 = vmatprep.subr.bf16.mxu0 0
      %811 = vmatpush2.bf16.msra.mxu0 0
      %812 = vmatprep.mubr.bf16.mxu0 0
      %813 = vmatmul.mubr.bf16.gmra.mxu0 %v775
      %v814 = vpop.f32.mrf.mxu0
      %v815 = vadd.f32 0.0, %v814
      %v816 = vpop.f32.mrf.mxu0
      %v817 = vpop.f32.mrf.mxu0
      %v818 = vpop.f32.mrf.mxu0
      %819 = vdwg.mxu0
      %821 = vrot.lane.b32.xlu0 %v815, 16
      %v822 = vpop.permute.xlu0 %821
      %vm824 = vcmask 195712
      %825 = vst.msk [vmem:[#allocation3] sm:$0xff] %vm824, %v822
      %826 = vrot.lane.b32.xlu0 %v479, 104
      %v827 = vpop.permute.xlu0 %826
      %828 = vrot.lane.b32.xlu0 %v542, 104
      %v829 = vpop.permute.xlu0 %828
      %v831 = vsel %vm481, %v827, 0
      %v834 = vsel %vm481, %v829, 0
      %836 = vmatprep.subr.bf16.mxu0 0
      %837 = vmatpush1.bf16.xpose.msra.mxu0 0
      %838 = vmatprep.subr.bf16.mxu0 0
      %839 = vmatpush1.bf16.xpose.msra.mxu0 0
      %840 = vmatprep.subr.bf16.mxu0 0
      %841 = vmatpush1.bf16.xpose.msra.mxu0 0
      %842 = vmatprep.subr.bf16.mxu0 0
      %843 = vmatpush1.bf16.xpose.msra.mxu0 0
      %844 = vmatprep.subr.bf16.mxu0 0
      %845 = vmatpush1.bf16.xpose.msra.mxu0 0
      %846 = vmatprep.subr.bf16.mxu0 0
      %847 = vmatpush1.bf16.xpose.msra.mxu0 0
      %848 = vmatprep.subr.bf16.mxu0 0
      %849 = vmatpush1.bf16.xpose.msra.mxu0 0
      %850 = vmatprep.subr.bf16.mxu0 0
      %851 = vmatpush1.bf16.xpose.msra.mxu0 %v834
      %852 = vmatprep.subr.bf16.mxu0 0
      %853 = vmatpush2.bf16.xpose.msra.mxu0 0
      %854 = vmatprep.subr.bf16.mxu0 0
      %855 = vmatpush2.bf16.xpose.msra.mxu0 0
      %856 = vmatprep.subr.bf16.mxu0 0
      %857 = vmatpush2.bf16.xpose.msra.mxu0 0
      %858 = vmatprep.subr.bf16.mxu0 0
      %859 = vmatpush2.bf16.xpose.msra.mxu0 0
      %860 = vmatprep.subr.bf16.mxu0 0
      %861 = vmatpush2.bf16.xpose.msra.mxu0 0
      %862 = vmatprep.subr.bf16.mxu0 0
      %863 = vmatpush2.bf16.xpose.msra.mxu0 0
      %864 = vmatprep.subr.bf16.mxu0 0
      %865 = vmatpush2.bf16.xpose.msra.mxu0 0
      %866 = vmatprep.subr.bf16.mxu0 0
      %867 = vmatpush2.bf16.xpose.msra.mxu0 0
      %868 = vmatprep.mubr.bf16.mxu0 0
      %869 = vmatmul.mubr.bf16.gmra.mxu0 %v831
      %v870 = vpop.f32.mrf.mxu0
      %v871 = vadd.f32 0.0, %v870
      %v872 = vpop.f32.mrf.mxu0
      %v873 = vpop.f32.mrf.mxu0
      %v874 = vpop.f32.mrf.mxu0
      %875 = vdwg.mxu0
      %v876 = vsel %vm481, %v871, -inf
      %877 = vmax.xlane.f32.xlu0 %v876
      %v878 = vpop.xlane.xlu0 %877
      %v879 = vsub.f32 %v871, %v878
      %v880 = vmul.f32 %v879, 1.442695
      %v881 = vpow.pop %v880
      %v882 = vsel %vm481, %v881, 0.0
      %883 = vadd.xlane.f32.xlu0 %v882
      %v884 = vpop.xlane.xlu0 %883
      %v885 = vrcp.pop %v884
      %v886 = vmul.f32 %v881, %v885
      %v887 = vpack.c.bf16 %v886, %v886
      %888 = vrot.lane.b32.xlu0 %v542, 72
      %v889 = vpop.permute.xlu0 %888
      %v891 = vsel %vm481, %v887, 0
      %v894 = vsel %vm548, %v889, 0
      %896 = vmatprep.subr.bf16.mxu0 0
      %897 = vmatpush1.bf16.msra.mxu0 0
      %898 = vmatprep.subr.bf16.mxu0 0
      %899 = vmatpush1.bf16.msra.mxu0 0
      %900 = vmatprep.subr.bf16.mxu0 0
      %901 = vmatpush1.bf16.msra.mxu0 0
      %902 = vmatprep.subr.bf16.mxu0 0
      %903 = vmatpush1.bf16.msra.mxu0 0
      %904 = vmatprep.subr.bf16.mxu0 0
      %905 = vmatpush1.bf16.msra.mxu0 0
      %906 = vmatprep.subr.bf16.mxu0 0
      %907 = vmatpush1.bf16.msra.mxu0 0
      %908 = vmatprep.subr.bf16.mxu0 0
      %909 = vmatpush1.bf16.msra.mxu0 0
      %910 = vmatprep.subr.bf16.mxu0 0
      %911 = vmatpush1.bf16.msra.mxu0 %v894
      %912 = vmatprep.subr.bf16.mxu0 0
      %913 = vmatpush2.bf16.msra.mxu0 0
      %914 = vmatprep.subr.bf16.mxu0 0
      %915 = vmatpush2.bf16.msra.mxu0 0
      %916 = vmatprep.subr.bf16.mxu0 0
      %917 = vmatpush2.bf16.msra.mxu0 0
      %918 = vmatprep.subr.bf16.mxu0 0
      %919 = vmatpush2.bf16.msra.mxu0 0
      %920 = vmatprep.subr.bf16.mxu0 0
      %921 = vmatpush2.bf16.msra.mxu0 0
      %922 = vmatprep.subr.bf16.mxu0 0
      %923 = vmatpush2.bf16.msra.mxu0 0
      %924 = vmatprep.subr.bf16.mxu0 0
      %925 = vmatpush2.bf16.msra.mxu0 0
      %926 = vmatprep.subr.bf16.mxu0 0
      %927 = vmatpush2.bf16.msra.mxu0 0
      %928 = vmatprep.mubr.bf16.mxu0 0
      %929 = vmatmul.mubr.bf16.gmra.mxu0 %v891
      %v930 = vpop.f32.mrf.mxu0
      %v931 = vadd.f32 0.0, %v930
      %v932 = vpop.f32.mrf.mxu0
      %v933 = vpop.f32.mrf.mxu0
      %v934 = vpop.f32.mrf.mxu0
      %935 = vdwg.mxu0
      %937 = vrot.lane.b32.xlu0 %v931, 24
      %v938 = vpop.permute.xlu0 %937
      %vm940 = vcmask 261312
      %941 = vst.msk [vmem:[#allocation3] sm:$0xff] %vm940, %v938
      %v942 = vld [vmem:[#allocation3] sm:$0xff]
      %v943 = vpack.c.bf16 %v942, %v942
      %v944 = vld [vmem:[%s4] sm:$0xf]
      %v945 = vld [vmem:[%s4 + $0x4] sm:$0xf]
      %v946 = vld [vmem:[%s4 + $0x8] sm:$0xf]
      %v947 = vld [vmem:[%s4 + $0xc] sm:$0xf]
      %v948 = vld [vmem:[%s5] sm:$0x1]
      %v950 = vlaneseq
      %v951 = vshrl.u32 %v950, 7
      %v952 = vsub.s32 0, %v951
      %v953 = vrot.slane %v948, %v952
      %v959 = vunpack.c.l.b16 %v944
      %v960 = vunpack.c.l.b16 %v945
      %v961 = vunpack.c.l.b16 %v946
      %v962 = vunpack.c.l.b16 %v947
      %v963 = vpack.c.b16 %v960, %v959
      %v964 = vpack.c.b16 %v962, %v961
      %v968 = vsel %vm435, %v943, 0
      %970 = vmatprep.subr.bf16.mxu0 0
      %971 = vmatpush1.bf16.msra.mxu0 0
      %972 = vmatprep.subr.bf16.mxu0 0
      %973 = vmatpush1.bf16.msra.mxu0 0
      %974 = vmatprep.subr.bf16.mxu0 0
      %975 = vmatpush1.bf16.msra.mxu0 0
      %976 = vmatprep.subr.bf16.mxu0 0
      %977 = vmatpush1.bf16.msra.mxu0 0
      %978 = vmatprep.subr.bf16.mxu0 0
      %979 = vmatpush1.bf16.msra.mxu0 0
      %980 = vmatprep.subr.bf16.mxu0 0
      %981 = vmatpush1.bf16.msra.mxu0 0
      %982 = vmatprep.subr.bf16.mxu0 0
      %983 = vmatpush1.bf16.msra.mxu0 %v964
      %984 = vmatprep.subr.bf16.mxu0 0
      %985 = vmatpush1.bf16.msra.mxu0 %v963
      %986 = vmatprep.subr.bf16.mxu0 0
      %987 = vmatpush2.bf16.msra.mxu0 0
      %988 = vmatprep.subr.bf16.mxu0 0
      %989 = vmatpush2.bf16.msra.mxu0 0
      %990 = vmatprep.subr.bf16.mxu0 0
      %991 = vmatpush2.bf16.msra.mxu0 0
      %992 = vmatprep.subr.bf16.mxu0 0
      %993 = vmatpush2.bf16.msra.mxu0 0
      %994 = vmatprep.subr.bf16.mxu0 0
      %995 = vmatpush2.bf16.msra.mxu0 0
      %996 = vmatprep.subr.bf16.mxu0 0
      %997 = vmatpush2.bf16.msra.mxu0 0
      %998 = vmatprep.subr.bf16.mxu0 0
      %999 = vmatpush2.bf16.msra.mxu0 0
      %1000 = vmatprep.subr.bf16.mxu0 0
      %1001 = vmatpush2.bf16.msra.mxu0 0
      %1002 = vmatprep.mubr.bf16.mxu0 0
      %1003 = vmatmul.mubr.bf16.gmra.mxu0 %v968
      %v1004 = vpop.f32.mrf.mxu0
      %v1005 = vadd.f32 %v953, %v1004
      %v1006 = vpop.f32.mrf.mxu0
      %v1007 = vpop.f32.mrf.mxu0
      %v1008 = vpop.f32.mrf.mxu0
      %1009 = vdwg.mxu0
      %v1010 = vunpack.c.l.bf16 %v350
      %v1011 = vadd.f32 %v1005, %v1010
      %v1012 = vsel %vm435, %v1011, 0.0
      %1013 = vadd.xlane.f32.xlu0 %v1012
      %v1014 = vpop.xlane.xlu0 %1013
      %v1015 = vrcp.pop 32.0
      %v1016 = vmul.f32 %v1014, %v1015
      %v1017 = vsub.f32 %v1011, %v1016
      %v1018 = vmul.f32 %v1017, %v1017
      %v1019 = vsel %vm435, %v1018, 0.0
      %1020 = vadd.xlane.f32.xlu0 %v1019
      %v1021 = vpop.xlane.xlu0 %1020
      %v1022 = vmul.f32 %v1021, %v1015
      %v1023 = vadd.f32 %v1022, 1e-05
      %v1024 = vrsqrt.pop %v1023
      %v1025 = vmul.f32 %v1017, %v1024
      %v1026 = vld [vmem:[%s6] sm:$0x1]
      %v1028 = vlaneseq
      %v1029 = vshrl.u32 %v1028, 7
      %v1030 = vsub.s32 0, %v1029
      %v1031 = vrot.slane %v1026, %v1030
      %v1033 = vmul.f32 %v1025, %v1031
      %v1034 = vld [vmem:[%s7] sm:$0x1]
      %v1036 = vlaneseq
      %v1037 = vshrl.u32 %v1036, 7
      %v1038 = vsub.s32 0, %v1037
      %v1039 = vrot.slane %v1034, %v1038
      %v1041 = vadd.f32 %v1033, %v1039
      %v1042 = vpack.c.bf16 %v1041, %v1041
      %vm1043 = vcmask 257024
      %1044 = vst.msk [vmem:[%s348] sm:$0xf] %vm1043, %v1042
      %p1045 = scmp.lt.s32.totalorder %s23, 1
      %s1046 = scalar_select %p1045, %s23, 1
      %p1047 = scmp.lt.s32.totalorder %s24, 0
      %s1048 = scalar_select %p1047, %s24, 0
      %s1049 = sadd.s32 %s1048, %s1046
      %s1050 = smul.addr %s1049, 4
      %s1051 = scalar_lea.vmem %s8, %s1050
      // Predicated region
      $region57: #{encoder_forward.6} parent=51 // pred_check
        %p1052 = pneg %p231
      $region58: #{encoder_forward.6} parent=51 // pred_check_branch
        %1054 = sbr.rel (%p1052) target = $region60
      $region59: #{encoder_forward.6} parent=51 // pred_region
        _
      $region60: #{encoder_forward.6} parent=51 // pred_fallthru
        _
    $region52: #{encoder_forward.6} parent=5 // pred_fallthru
      _
    %p1055 = scmp.le.s32.totalorder 2, %s14
    // Predicated region
    $region61: #{encoder_forward.6} parent=5 // pred_check
      %p1056 = pneg %p1055
    $region62: #{encoder_forward.6} parent=5 // pred_check_branch
      %1058 = sbr.rel (%p1056) target = $region64
    $region63: #{encoder_forward.6} parent=5 // pred_region
      %s1059 = ssub.s32 %s14, 2
      // Predicated region
      $region65: #{encoder_forward.6} parent=63 // pred_check
        %p1060 = pneg %p237
      $region66: #{encoder_forward.6} parent=63 // pred_check_branch
        %1062 = sbr.rel (%p1060) target = $region68
      $region67: #{encoder_forward.6} parent=63 // pred_region
        %p1063 = scmp.lt.s32.totalorder %s25, 1
        %s1064 = scalar_select %p1063, %s25, 1
        %p1065 = scmp.lt.s32.totalorder %s26, 0
        %s1066 = scalar_select %p1065, %s26, 0
        %s1067 = sadd.s32 %s1066, %s1064
        %s1068 = smul.addr %s1067, 4
        %s1069 = scalar_lea.vmem %s8, %s1068
      $region68: #{encoder_forward.6} parent=63 // pred_fallthru
        _
    $region64: #{encoder_forward.6} parent=5 // pred_fallthru
      _
  $region6: #{encoder_forward.6} parent=0 // loop_footer
    %s18 = sadd.s32 1, %s14
  $region7: #{encoder_forward.6} parent=0 // loop_footer_branch
    %13 = sbr.rel target = $region3
  $region8: #{encoder_forward.6} parent=0 // loop_exit
    _

// kernel: encoder_forward.7
$region0: #{encoder_forward.7}
  #allocation0 [shape = 'u32[]', space=smem, size = 0x4, offset = 0x4, fixed_abs, tag = 'smem constant byte address 0x4 - core index']
  #allocation1 [shape = 'u32[144,128]{1,0:T(1,128)}', space=vmem, size = 0x12000, scoped, tag = 'internal scratch']
  %s0 = inlined_call_operand.vmem [shape: bf16[16,32], index: 0, kind: input, shape index: {}]
  %s1 = inlined_call_operand.vmem [shape: bf16[32,64], index: 1, kind: input, shape index: {}]
  %s2 = inlined_call_operand.vmem [shape: f32[1,64], index: 2, kind: input, shape index: {}]
  %s3 = inlined_call_operand.vmem [shape: bf16[64,32], index: 3, kind: input, shape index: {}]
  %s4 = inlined_call_operand.vmem [shape: f32[1,32], index: 4, kind: input, shape index: {}]
  %s5 = inlined_call_operand.vmem [shape: f32[1,32], index: 5, kind: input, shape index: {}]
  %s6 = inlined_call_operand.vmem [shape: f32[1,32], index: 6, kind: input, shape index: {}]
  %s7 = inlined_call_operand.vmem [shape: bf16[16,32], index: 7, kind: output, shape index: {}]
  %s8 = sld [smem:[#allocation0]]
  $region38: #{encoder_forward.7} parent=0
    _
  %s10 = ssub.s32 1, %s8
  %s11 = scalar_select 0, %s10, %s8
  // Predicated region
  $region2: #{encoder_forward.7} parent=0 // pred_check
    _
  $region3: #{encoder_forward.7} parent=0 // pred_check_branch
    %13 = sbr.rel (0) target = $region5
  $region4: #{encoder_forward.7} parent=0 // pred_region
    _
  $region5: #{encoder_forward.7} parent=0 // pred_fallthru
    _
  // Predicated region
  $region6: #{encoder_forward.7} parent=0 // pred_check
    _
  $region7: #{encoder_forward.7} parent=0 // pred_check_branch
    %15 = sbr.rel (0) target = $region9
  $region8: #{encoder_forward.7} parent=0 // pred_region
    _
  $region9: #{encoder_forward.7} parent=0 // pred_fallthru
    _
  // Predicated region
  $region10: #{encoder_forward.7} parent=0 // pred_check
    _
  $region11: #{encoder_forward.7} parent=0 // pred_check_branch
    %17 = sbr.rel (0) target = $region13
  $region12: #{encoder_forward.7} parent=0 // pred_region
    _
  $region13: #{encoder_forward.7} parent=0 // pred_fallthru
    _
  // Predicated region
  $region14: #{encoder_forward.7} parent=0 // pred_check
    _
  $region15: #{encoder_forward.7} parent=0 // pred_check_branch
    %19 = sbr.rel (0) target = $region17
  $region16: #{encoder_forward.7} parent=0 // pred_region
    _
  $region17: #{encoder_forward.7} parent=0 // pred_fallthru
    _
  // Predicated region
  $region18: #{encoder_forward.7} parent=0 // pred_check
    _
  $region19: #{encoder_forward.7} parent=0 // pred_check_branch
    %21 = sbr.rel (0) target = $region21
  $region20: #{encoder_forward.7} parent=0 // pred_region
    _
  $region21: #{encoder_forward.7} parent=0 // pred_fallthru
    _
  // Predicated region
  $region22: #{encoder_forward.7} parent=0 // pred_check
    _
  $region23: #{encoder_forward.7} parent=0 // pred_check_branch
    %23 = sbr.rel (0) target = $region25
  $region24: #{encoder_forward.7} parent=0 // pred_region
    _
  $region25: #{encoder_forward.7} parent=0 // pred_fallthru
    _
  // Predicated region
  $region26: #{encoder_forward.7} parent=0 // pred_check
    _
  $region27: #{encoder_forward.7} parent=0 // pred_check_branch
    %25 = sbr.rel (0) target = $region29
  $region28: #{encoder_forward.7} parent=0 // pred_region
    _
  $region29: #{encoder_forward.7} parent=0 // pred_fallthru
    _
  %v27 = vld [vmem:[%s0] sm:$0xf]
  %v28 = vld [vmem:[%s0 + $0x4] sm:$0xf]
  %v29 = vld [vmem:[%s1] sm:$0xf]
  %v30 = vld [vmem:[%s1 + $0x4] sm:$0xf]
  %v31 = vld [vmem:[%s1 + $0x8] sm:$0xf]
  %v32 = vld [vmem:[%s1 + $0xc] sm:$0xf]
  %v33 = vld [vmem:[%s2] sm:$0x1]
  %v35 = vlaneseq
  %v36 = vshrl.u32 %v35, 7
  %v37 = vsub.s32 0, %v36
  %v38 = vrot.slane %v33, %v37
  %v42 = vunpack.c.l.b16 %v27
  %v43 = vunpack.c.l.b16 %v28
  %v44 = vpack.c.b16 %v43, %v42
  %v49 = vunpack.c.l.b16 %v29
  %v50 = vunpack.c.l.b16 %v30
  %v51 = vunpack.c.l.b16 %v31
  %v52 = vunpack.c.l.b16 %v32
  %v53 = vpack.c.b16 %v50, %v49
  %v54 = vpack.c.b16 %v52, %v51
  %vm57 = vcmask 261120
  %v59 = vsel %vm57, %v44, 0
  %61 = vmatprep.subr.bf16.mxu0 0
  %62 = vmatpush1.bf16.msra.mxu0 0
  %63 = vmatprep.subr.bf16.mxu0 0
  %64 = vmatpush1.bf16.msra.mxu0 0
  %65 = vmatprep.subr.bf16.mxu0 0
  %66 = vmatpush1.bf16.msra.mxu0 0
  %67 = vmatprep.subr.bf16.mxu0 0
  %68 = vmatpush1.bf16.msra.mxu0 0
  %69 = vmatprep.subr.bf16.mxu0 0
  %70 = vmatpush1.bf16.msra.mxu0 0
  %71 = vmatprep.subr.bf16.mxu0 0
  %72 = vmatpush1.bf16.msra.mxu0 0
  %73 = vmatprep.subr.bf16.mxu0 0
  %74 = vmatpush1.bf16.msra.mxu0 %v54
  %75 = vmatprep.subr.bf16.mxu0 0
  %76 = vmatpush1.bf16.msra.mxu0 %v53
  %77 = vmatprep.subr.bf16.mxu0 0
  %78 = vmatpush2.bf16.msra.mxu0 0
  %79 = vmatprep.subr.bf16.mxu0 0
  %80 = vmatpush2.bf16.msra.mxu0 0
  %81 = vmatprep.subr.bf16.mxu0 0
  %82 = vmatpush2.bf16.msra.mxu0 0
  %83 = vmatprep.subr.bf16.mxu0 0
  %84 = vmatpush2.bf16.msra.mxu0 0
  %85 = vmatprep.subr.bf16.mxu0 0
  %86 = vmatpush2.bf16.msra.mxu0 0
  %87 = vmatprep.subr.bf16.mxu0 0
  %88 = vmatpush2.bf16.msra.mxu0 0
  %89 = vmatprep.subr.bf16.mxu0 0
  %90 = vmatpush2.bf16.msra.mxu0 0
  %91 = vmatprep.subr.bf16.mxu0 0
  %92 = vmatpush2.bf16.msra.mxu0 0
  %93 = vmatprep.mubr.bf16.mxu0 0
  %94 = vmatmul.mubr.bf16.gmra.mxu0 %v59
  %v95 = vpop.f32.mrf.mxu0
  %v96 = vadd.f32 %v38, %v95
  %v97 = vpop.f32.mrf.mxu0
  %v98 = vpop.f32.mrf.mxu0
  %v99 = vadd.f32 %v38, %v98
  %v100 = vpop.f32.mrf.mxu0
  %101 = vdwg.mxu0
  %v102 = vmax.f32 %v96, 0.0
  %v103 = vmax.f32 %v99, 0.0
  %v104 = vpack.c.bf16 %v103, %v102
  %v105 = vld [vmem:[%s3] sm:$0xf]
  %v106 = vld [vmem:[%s3 + $0x4] sm:$0xf]
  %v107 = vld [vmem:[%s3 + $0x8] sm:$0xf]
  %v108 = vld [vmem:[%s3 + $0xc] sm:$0xf]
  %v109 = vld [vmem:[%s3 + $0x10] sm:$0xf]
  %v110 = vld [vmem:[%s3 + $0x14] sm:$0xf]
  %v111 = vld [vmem:[%s3 + $0x18] sm:$0xf]
  %v112 = vld [vmem:[%s3 + $0x1c] sm:$0xf]
  %v113 = vld [vmem:[%s4] sm:$0x1]
  %v115 = vlaneseq
  %v116 = vshrl.u32 %v115, 7
  %v117 = vsub.s32 0, %v116
  %v118 = vrot.slane %v113, %v117
  %v128 = vunpack.c.l.b16 %v105
  %v129 = vunpack.c.l.b16 %v106
  %v130 = vunpack.c.l.b16 %v107
  %v131 = vunpack.c.l.b16 %v108
  %v132 = vunpack.c.l.b16 %v109
  %v133 = vunpack.c.l.b16 %v110
  %v134 = vunpack.c.l.b16 %v111
  %v135 = vunpack.c.l.b16 %v112
  %v136 = vpack.c.b16 %v129, %v128
  %v137 = vpack.c.b16 %v131, %v130
  %v138 = vpack.c.b16 %v133, %v132
  %v139 = vpack.c.b16 %v135, %v134
  %vm144 = vcmask 523264
  %v146 = vsel %vm144, %v104, 0
  %148 = vmatprep.subr.bf16.mxu0 0
  %149 = vmatpush1.bf16.msra.mxu0 0
  %150 = vmatprep.subr.bf16.mxu0 0
  %151 = vmatpush1.bf16.msra.mxu0 0
  %152 = vmatprep.subr.bf16.mxu0 0
  %153 = vmatpush1.bf16.msra.mxu0 0
  %154 = vmatprep.subr.bf16.mxu0 0
  %155 = vmatpush1.bf16.msra.mxu0 0
  %156 = vmatprep.subr.bf16.mxu0 0
  %157 = vmatpush1.bf16.msra.mxu0 %v139
  %158 = vmatprep.subr.bf16.mxu0 0
  %159 = vmatpush1.bf16.msra.mxu0 %v138
  %160 = vmatprep.subr.bf16.mxu0 0
  %161 = vmatpush1.bf16.msra.mxu0 %v137
  %162 = vmatprep.subr.bf16.mxu0 0
  %163 = vmatpush1.bf16.msra.mxu0 %v136
  %164 = vmatprep.subr.bf16.mxu0 0
  %165 = vmatpush2.bf16.msra.mxu0 0
  %166 = vmatprep.subr.bf16.mxu0 0
  %167 = vmatpush2.bf16.msra.mxu0 0
  %168 = vmatprep.subr.bf16.mxu0 0
  %169 = vmatpush2.bf16.msra.mxu0 0
  %170 = vmatprep.subr.bf16.mxu0 0
  %171 = vmatpush2.bf16.msra.mxu0 0
  %172 = vmatprep.subr.bf16.mxu0 0
  %173 = vmatpush2.bf16.msra.mxu0 0
  %174 = vmatprep.subr.bf16.mxu0 0
  %175 = vmatpush2.bf16.msra.mxu0 0
  %176 = vmatprep.subr.bf16.mxu0 0
  %177 = vmatpush2.bf16.msra.mxu0 0
  %178 = vmatprep.subr.bf16.mxu0 0
  %179 = vmatpush2.bf16.msra.mxu0 0
  %180 = vmatprep.mubr.bf16.mxu0 0
  %181 = vmatmul.mubr.bf16.gmra.mxu0 %v146
  %v182 = vpop.f32.mrf.mxu0
  %v183 = vadd.f32 %v118, %v182
  %v184 = vpop.f32.mrf.mxu0
  %v185 = vpop.f32.mrf.mxu0
  %v186 = vadd.f32 %v118, %v185
  %v187 = vpop.f32.mrf.mxu0
  %188 = vdwg.mxu0
  %v189 = vunpack.c.l.bf16 %v27
  %v190 = vunpack.c.l.bf16 %v28
  %v191 = vadd.f32 %v183, %v189
  %v192 = vadd.f32 %v186, %v190
  %v193 = vsel %vm57, %v191, 0.0
  %194 = vadd.xlane.f32.xlu0 %v193
  %v195 = vpop.xlane.xlu0 %194
  %v196 = vsel %vm57, %v192, 0.0
  %197 = vadd.xlane.f32.xlu0 %v196
  %v198 = vpop.xlane.xlu0 %197
  %v199 = vrcp.pop 32.0
  %v200 = vmul.f32 %v195, %v199
  %v201 = vmul.f32 %v198, %v199
  %v202 = vsub.f32 %v191, %v200
  %v203 = vsub.f32 %v192, %v201
  %v204 = vmul.f32 %v202, %v202
  %v205 = vmul.f32 %v203, %v203
  %v206 = vsel %vm57, %v204, 0.0
  %207 = vadd.xlane.f32.xlu0 %v206
  %v208 = vpop.xlane.xlu0 %207
  %v209 = vsel %vm57, %v205, 0.0
  %210 = vadd.xlane.f32.xlu0 %v209
  %v211 = vpop.xlane.xlu0 %210
  %v212 = vmul.f32 %v208, %v199
  %v213 = vmul.f32 %v211, %v199
  %v214 = vadd.f32 %v212, 1e-05
  %v215 = vadd.f32 %v213, 1e-05
  %v216 = vrsqrt.pop %v214
  %v217 = vrsqrt.pop %v215
  %v218 = vmul.f32 %v202, %v216
  %v219 = vmul.f32 %v203, %v217
  %v220 = vld [vmem:[%s5] sm:$0x1]
  %v222 = vlaneseq
  %v223 = vshrl.u32 %v222, 7
  %v224 = vsub.s32 0, %v223
  %v225 = vrot.slane %v220, %v224
  %v227 = vmul.f32 %v218, %v225
  %v228 = vmul.f32 %v219, %v225
  %v229 = vld [vmem:[%s6] sm:$0x1]
  %v231 = vlaneseq
  %v232 = vshrl.u32 %v231, 7
  %v233 = vsub.s32 0, %v232
  %v234 = vrot.slane %v229, %v233
  %v236 = vadd.f32 %v227, %v234
  %v237 = vadd.f32 %v228, %v234
  %v238 = vpack.c.bf16 %v237, %v236
  %v240 = vunpack.c.l.b16 %v238
  %v241 = vunpack.c.h.b16 %v238
  %v242 = vpack.c.b16 %v240, %v240
  %v243 = vpack.c.b16 %v241, %v241
  %vm246 = vcmask 257024
  %247 = vst.msk [vmem:[%s7] sm:$0xf] %vm246, %v242
  %248 = vst.msk [vmem:[%s7 + $0x4] sm:$0xf] %vm246, %v243
  // Predicated region
  $region30: #{encoder_forward.7} parent=0 // pred_check
    _
  $region31: #{encoder_forward.7} parent=0 // pred_check_branch
    %250 = sbr.rel (0) target = $region33
  $region32: #{encoder_forward.7} parent=0 // pred_region
    _
  $region33: #{encoder_forward.7} parent=0 // pred_fallthru
    _
  // Predicated region
  $region34: #{encoder_forward.7} parent=0 // pred_check
    _
  $region35: #{encoder_forward.7} parent=0 // pred_check_branch
    %252 = sbr.rel (0) target = $region37
  $region36: #{encoder_forward.7} parent=0 // pred_region
    _
  $region37: #{encoder_forward.7} parent=0 // pred_fallthru
    _

</llo_original>
